<compile_context>
chip_gen: v6e
topology: v6e:2x2x1
jax: 0.10.0
libtpu: 0.0.40
codegen_flags: <defaults>
</compile_context>

<pallas_src>
import functools

import jax
import jax.numpy as jnp
from jax.experimental import pallas as pl
from jax.experimental.pallas import tpu as pltpu


def _residual_attn_kernel(x_ref, wqkv_ref, b1_ref, pos_ref, wp_ref, b2_ref,
                          o_ref, *, num_heads, kq_dim, v_dim, batch, tokens):
    """One grid step: `batch` whole batch elements (tokens each), fully fused."""
    m = batch * tokens
    nh_kq = num_heads * kq_dim
    nh_v = num_heads * v_dim
    h = 2 * nh_kq + nh_v
    mxu_dtype = wqkv_ref.dtype            # bf16 when use_bf16_mxu, else f32

    x = x_ref[...]                                                 # (m, C)

    # qkv = Linear_BN(dim, h): BN1 scale and the attention softmax scale
    # (q columns) are already folded into wqkv/b1 in the wrapper.
    qkv = jnp.dot(x.astype(mxu_dtype), wqkv_ref[...],
                  preferred_element_type=jnp.float32)              # (m, h) f32
    qkv = qkv + b1_ref[...]
    # Single hoisted cast for every MXU consumer in the head loop; leading-dim
    # split only (lane axis untouched) -> cheap.
    qkv_m = qkv.astype(mxu_dtype).reshape(batch, tokens, h)

    ctx_heads = []
    for hd in range(num_heads):
        # Head-major column layout [Q_all | K_all | V_all]: all slices are
        # 16/32-lane aligned and never straddle a 128-lane vreg boundary.
        q = qkv_m[:, :, hd * kq_dim:(hd + 1) * kq_dim]             # (b, N, kq)
        k = qkv_m[:, :, nh_kq + hd * kq_dim:nh_kq + (hd + 1) * kq_dim]
        v = qkv_m[:, :, 2 * nh_kq + hd * v_dim:2 * nh_kq + (hd + 1) * v_dim]

        s = jnp.einsum('bqd,bkd->bqk', q, k,
                       preferred_element_type=jnp.float32)         # (b, N, N)
        s = s + pos_ref[hd][None, :, :]                            # learned pos bias
        s = s - jnp.max(s, axis=-1, keepdims=True)
        p = jnp.exp(s)
        denom = jnp.sum(p, axis=-1, keepdims=True)
        attn = p * pl.reciprocal(denom, approx=True)               # EUP, not VALU div

        ctx = jnp.einsum('bqk,bkd->bqd', attn.astype(mxu_dtype), v,
                         preferred_element_type=jnp.float32)       # (b, N, vd)
        ctx_heads.append(jnp.clip(ctx, -1.0, 1.0))                 # Hardtanh

    # Lane-concat all heads -> (m, nh_v = 128): one lane-dense K=128 projection
    # matmul instead of 4 tiny per-head dots plus a serialized add chain.
    ctx_all = jnp.concatenate(ctx_heads, axis=-1).reshape(m, nh_v)
    y = jnp.dot(ctx_all.astype(mxu_dtype), wp_ref[...],
                preferred_element_type=jnp.float32)                # (m, C)
    y = y + b2_ref[...]                                            # BN2 shift

    # Residual add (eval mode).
    # TODO(synk): training-mode stochastic depth (per-sample Bernoulli drop of
    # func(x) scaled by 1/(1-drop)) is not implemented.
    o_ref[...] = (x.astype(jnp.float32) + y).astype(o_ref.dtype)


def residual_attention(x, params, *, num_heads, kq_dim, v_dim, scale,
                       grid_blocks=1, use_bf16_mxu=True,
                       vmem_limit_bytes=None):
    """out = x + attention_block(x).  params = (w_qkv, bn1_scale, bn1_shift,
    pos_bias, w_proj, bn2_scale, bn2_shift).  BN is eval-mode (affine fold).

    grid_blocks=1 fully fuses the batch (best at small shapes and on 1-TC
    chips); grid_blocks=2 shards across v7x's two TensorCores once per-TC work
    amortizes the grid-step overhead.  use_bf16_mxu=True feeds bf16 operands to
    the MXU with f32 accumulation (native single-pass on v5e/v6e/v7x).
    vmem_limit_bytes raises the scoped-VMEM ceiling when B*N grows."""
    B, N, C = x.shape
    w_qkv, bn1_scale, bn1_shift, pos_bias, w_proj, bn2_scale, bn2_shift = params
    h = w_qkv.shape[1]
    per_head = 2 * kq_dim + v_dim
    nh_kq = num_heads * kq_dim
    nh_v = num_heads * v_dim
    dim_out = w_proj.shape[1]
    assert dim_out == C, "Residual requires func output dim == input dim"
    assert h == num_heads * per_head
    assert B % grid_blocks == 0

    # --- column permutation: per-head [q|k|v] interleave -> head-major -------
    #     [Q_all | K_all | V_all] so kernel slices are vreg-friendly.
    idx = jnp.arange(h).reshape(num_heads, per_head)
    perm = jnp.concatenate([idx[:, :kq_dim].reshape(-1),
                            idx[:, kq_dim:2 * kq_dim].reshape(-1),
                            idx[:, 2 * kq_dim:].reshape(-1)])
    w_qkv_p = w_qkv[:, perm]
    bn1_scale_p = bn1_scale[:, perm]
    bn1_shift_p = bn1_shift[:, perm]

    # --- fold BN affine (eval mode) + attention scale into the weights -------
    # After the permutation the q columns are simply the first nh_kq columns.
    # TODO(synk): training-mode BatchNorm (batch statistics) is not implemented.
    col_scale = jnp.where(jnp.arange(h) < nh_kq, scale, 1.0).astype(jnp.float32)
    w_qkv_f = w_qkv_p * (bn1_scale_p * col_scale[None, :])
    b1_f = bn1_shift_p * col_scale[None, :]
    w_proj_f = w_proj * bn2_scale.reshape(1, dim_out)
    b2_f = bn2_shift.reshape(1, dim_out)

    mxu_dtype = jnp.bfloat16 if use_bf16_mxu else jnp.float32
    w_qkv_f = w_qkv_f.astype(mxu_dtype)
    w_proj_f = w_proj_f.astype(mxu_dtype)

    # Flatten (B, N, C) -> (B*N, C): whole batch goes through one matmul/block.
    x2 = x.reshape(B * N, C)
    m_blk = (B // grid_blocks) * N

    kernel = functools.partial(
        _residual_attn_kernel, num_heads=num_heads, kq_dim=kq_dim,
        v_dim=v_dim, batch=B // grid_blocks, tokens=N)

    out2 = pl.pallas_call(
        kernel,
        out_shape=jax.ShapeDtypeStruct((B * N, C), x.dtype),
        grid=(grid_blocks,),
        in_specs=[
            pl.BlockSpec((m_blk, C), lambda i: (i, 0)),            # x (flattened)
            pl.BlockSpec((C, h), lambda i: (0, 0)),                # W_qkv (folded, permuted)
            pl.BlockSpec((1, h), lambda i: (0, 0)),                # bn1 shift (folded, permuted)
            pl.BlockSpec((num_heads, N, N), lambda i: (0, 0, 0)),  # pos bias
            pl.BlockSpec((nh_v, dim_out), lambda i: (0, 0)),       # W_proj (folded)
            pl.BlockSpec((1, dim_out), lambda i: (0, 0)),          # bn2 shift
        ],
        out_specs=pl.BlockSpec((m_blk, C), lambda i: (i, 0)),
        compiler_params=pltpu.CompilerParams(
            dimension_semantics=("parallel",),
            vmem_limit_bytes=vmem_limit_bytes),
    )(x2, w_qkv_f, b1_f, pos_bias, w_proj_f, b2_f)
    # Note: output lane width C=32 (<128) -> masked stores; at these shapes the
    # kernel is launch-bound so a lane-dense output repack isn't worth it.
    return out2.reshape(B, N, C)


def reference(x, params, *, num_heads, kq_dim, v_dim, scale):
    """Pure-JAX (f32) mirror of Residual(attention_block) forward, BN eval mode."""
    w_qkv, bn1s, bn1b, pos_bias, w_proj, bn2s, bn2b = params
    B, N, C = x.shape
    qkv = jnp.einsum('bnc,ch->bnh', x, w_qkv) * bn1s + bn1b
    qkv4 = qkv.reshape(B, N, num_heads, 2 * kq_dim + v_dim)
    q = qkv4[..., :kq_dim].transpose(0, 2, 1, 3)
    k = qkv4[..., kq_dim:2 * kq_dim].transpose(0, 2, 1, 3)
    v = qkv4[..., 2 * kq_dim:].transpose(0, 2, 1, 3)
    attn = jnp.einsum('bhqd,bhkd->bhqk', q, k) * scale + pos_bias[None]
    attn = jax.nn.softmax(attn, axis=-1)
    ctx = jnp.einsum('bhqk,bhkd->bhqd', attn, v)
    ctx = ctx.transpose(0, 2, 1, 3).reshape(B, N, num_heads * v_dim)
    ctx = jnp.clip(ctx, -1.0, 1.0)
    y = jnp.einsum('bnv,vo->bno', ctx, w_proj) * bn2s + bn2b
    return x + y                      # Residual, eval mode (no drop)


if __name__ == "__main__":
    # Small shapes consistent with the module: Residual requires dim_out == dim.
    B = 2
    token_num = 8      # N
    dim = 32           # C == dim_out (residual)
    num_heads = 4
    attn_ratio = 2

    kq_dim = dim // attn_ratio              # 16 (per-head key/query dim)
    v_dim = dim                             # 32 (per-head value dim)
    nh_kq = kq_dim * num_heads              # 64
    nh_v = v_dim * num_heads                # 128
    h = nh_kq * 2 + nh_v                    # 256
    scale = kq_dim ** (-0.5)                # standard key_dim**-0.5 scaling

    key = jax.random.PRNGKey(0)
    k_x, k_wqkv, k_pos, k_wp = jax.random.split(key, 4)

    x = jax.random.normal(k_x, (B, token_num, dim), dtype=jnp.float32)

    # Deterministic synthetic parameters (mirrors module __init__ shapes).
    w_qkv = jax.random.normal(k_wqkv, (dim, h), dtype=jnp.float32) * 0.05
    w_proj = jax.random.normal(k_wp, (nh_v, dim), dtype=jnp.float32) * 0.05
    pos_bias = jax.random.normal(k_pos, (num_heads, token_num, token_num),
                                 dtype=jnp.float32)

    # BatchNorm1d, inference mode, PyTorch default init:
    # gamma=1, beta=0, running_mean=0, running_var=1.
    eps = 1e-5
    bn1_scale = (jnp.ones((1, h)) / jnp.sqrt(1.0 + eps)).astype(jnp.float32)
    bn1_shift = jnp.zeros((1, h), dtype=jnp.float32)
    bn2_scale = (jnp.ones((1, dim)) / jnp.sqrt(1.0 + eps)).astype(jnp.float32)
    bn2_shift = jnp.zeros((1, dim), dtype=jnp.float32)

    params = (w_qkv, bn1_scale, bn1_shift, pos_bias, w_proj, bn2_scale, bn2_shift)

    out = residual_attention(x, params, num_heads=num_heads, kq_dim=kq_dim,
                             v_dim=v_dim, scale=scale,
                             grid_blocks=1, use_bf16_mxu=True)
    out = jax.block_until_ready(out)

    ref = reference(x, params, num_heads=num_heads, kq_dim=kq_dim,
                    v_dim=v_dim, scale=scale)
    assert out.shape == (B, token_num, dim)
    # Relaxed tolerance: bf16 MXU operands (f32 accumulation) plus the EUP
    # approximate reciprocal in the softmax denominator vs an all-f32 reference.
    assert jnp.allclose(out, ref, atol=2e-2, rtol=2e-2), "mismatch vs reference"

    print("KERNEL_OK")
</pallas_src>

<mosaic_0001>
module attributes {stable_mosaic.version = 11 : i64} {
  func.func @_residual_attn_kernel(%arg0: i32, %arg1: memref<16x32xf32, #tpu.memory_space<vmem>>, %arg2: memref<32x256xbf16, #tpu.memory_space<vmem>>, %arg3: memref<1x256xf32, #tpu.memory_space<vmem>>, %arg4: memref<4x8x8xf32, #tpu.memory_space<vmem>>, %arg5: memref<128x32xbf16, #tpu.memory_space<vmem>>, %arg6: memref<1x32xf32, #tpu.memory_space<vmem>>, %arg7: memref<16x32xf32, #tpu.memory_space<vmem>>) attributes {dimension_semantics = [#tpu.dimension_semantics<parallel>], iteration_bounds = array<i64: 1>, scalar_prefetch = 0 : i64, scratch_operands = 0 : i64, tpu.core_type = #tpu.core_type<tc>, window_params = [{transform_indices = @transform_0, window_bounds = array<i64: 16, 32>}, {pipeline_mode = #tpu.pipeline_mode<synchronous>, transform_indices = @transform_1, window_bounds = array<i64: 32, 256>}, {pipeline_mode = #tpu.pipeline_mode<synchronous>, transform_indices = @transform_2, window_bounds = array<i64: 1, 256>}, {pipeline_mode = #tpu.pipeline_mode<synchronous>, transform_indices = @transform_3, window_bounds = array<i64: 4, 8, 8>}, {pipeline_mode = #tpu.pipeline_mode<synchronous>, transform_indices = @transform_4, window_bounds = array<i64: 128, 32>}, {pipeline_mode = #tpu.pipeline_mode<synchronous>, transform_indices = @transform_5, window_bounds = array<i64: 1, 32>}, {transform_indices = @transform_6, window_bounds = array<i64: 16, 32>}]} {
    %c0 = arith.constant 0 : index
    %c0_0 = arith.constant 0 : index
    %0 = vector.load %arg1[%c0, %c0_0] : memref<16x32xf32, #tpu.memory_space<vmem>>, vector<16x32xf32>
    %1 = arith.truncf %0 : vector<16x32xf32> to vector<16x32xbf16>
    %c0_1 = arith.constant 0 : index
    %c0_2 = arith.constant 0 : index
    %2 = vector.load %arg2[%c0_1, %c0_2] : memref<32x256xbf16, #tpu.memory_space<vmem>>, vector<32x256xbf16>
    %cst = arith.constant dense<0.000000e+00> : vector<16x256xf32>
    %3 = tpu.matmul %1, %2, %cst {dimension_numbers = #tpu.dot_dimension_numbers<[1], [0], [0], [1], [0, 0, 1, 1], [], []>} : vector<16x32xbf16>, vector<32x256xbf16>, vector<16x256xf32> -> vector<16x256xf32>
    %c0_3 = arith.constant 0 : index
    %c0_4 = arith.constant 0 : index
    %4 = vector.load %arg3[%c0_3, %c0_4] : memref<1x256xf32, #tpu.memory_space<vmem>>, vector<1x256xf32>
    %5 = vector.broadcast %4 : vector<1x256xf32> to vector<16x256xf32>
    %6 = arith.addf %3, %5 : vector<16x256xf32>
    %7 = arith.truncf %6 : vector<16x256xf32> to vector<16x256xbf16>
    %8 = vector.shape_cast %7 : vector<16x256xbf16> to vector<2x8x256xbf16>
    %9 = vector.extract_strided_slice %8 {offsets = [0, 0, 0], sizes = [2, 8, 16], strides = [1, 1, 1]} : vector<2x8x256xbf16> to vector<2x8x16xbf16>
    %10 = vector.extract_strided_slice %8 {offsets = [0, 0, 64], sizes = [2, 8, 16], strides = [1, 1, 1]} : vector<2x8x256xbf16> to vector<2x8x16xbf16>
    %11 = vector.extract_strided_slice %8 {offsets = [0, 0, 128], sizes = [2, 8, 32], strides = [1, 1, 1]} : vector<2x8x256xbf16> to vector<2x8x32xbf16>
    "tpu.trace_start"() <{level = 10 : i32, message = "bqd,bkd->bqk"}> : () -> ()
    %cst_5 = arith.constant dense<0.000000e+00> : vector<2x8x8xf32>
    %12 = tpu.matmul %9, %10, %cst_5 {dimension_numbers = #tpu.dot_dimension_numbers<[2], [2], [1], [1], [0, 0, 0, 1, 1, 1], [0], [0]>} : vector<2x8x16xbf16>, vector<2x8x16xbf16>, vector<2x8x8xf32> -> vector<2x8x8xf32>
    "tpu.trace_stop"() : () -> ()
    %c0_6 = arith.constant 0 : index
    %c0_7 = arith.constant 0 : index
    %c0_8 = arith.constant 0 : index
    %13 = vector.load %arg4[%c0_6, %c0_7, %c0_8] : memref<4x8x8xf32, #tpu.memory_space<vmem>>, vector<1x8x8xf32>
    %14 = vector.shape_cast %13 : vector<1x8x8xf32> to vector<8x8xf32>
    %15 = vector.shape_cast %14 : vector<8x8xf32> to vector<1x8x8xf32>
    %16 = vector.broadcast %15 : vector<1x8x8xf32> to vector<2x8x8xf32>
    %17 = arith.addf %12, %16 : vector<2x8x8xf32>
    %cst_9 = arith.constant dense<0xFF800000> : vector<2x8xf32>
    %18 = vector.multi_reduction <maximumf>, %17, %cst_9 [2] : vector<2x8x8xf32> to vector<2x8xf32>
    %19 = vector.shape_cast %18 : vector<2x8xf32> to vector<2x8x1xf32>
    %20 = vector.broadcast %19 : vector<2x8x1xf32> to vector<2x8x8xf32>
    %21 = arith.subf %17, %20 : vector<2x8x8xf32>
    %22 = math.exp %21 : vector<2x8x8xf32>
    %cst_10 = arith.constant dense<0.000000e+00> : vector<2x8xf32>
    %23 = vector.multi_reduction <add>, %22, %cst_10 [2] : vector<2x8x8xf32> to vector<2x8xf32>
    %24 = vector.shape_cast %23 : vector<2x8xf32> to vector<2x8x1xf32>
    %25 = tpu.reciprocal %24 {approx = true} : vector<2x8x1xf32> -> vector<2x8x1xf32>
    %26 = vector.broadcast %25 : vector<2x8x1xf32> to vector<2x8x8xf32>
    %27 = arith.mulf %22, %26 : vector<2x8x8xf32>
    %28 = arith.truncf %27 : vector<2x8x8xf32> to vector<2x8x8xbf16>
    "tpu.trace_start"() <{level = 10 : i32, message = "bqk,bkd->bqd"}> : () -> ()
    %cst_11 = arith.constant dense<0.000000e+00> : vector<2x8x32xf32>
    %29 = tpu.matmul %28, %11, %cst_11 {dimension_numbers = #tpu.dot_dimension_numbers<[2], [1], [1], [2], [0, 0, 0, 1, 1, 2], [0], [0]>} : vector<2x8x8xbf16>, vector<2x8x32xbf16>, vector<2x8x32xf32> -> vector<2x8x32xf32>
    %cst_12 = arith.constant -1.000000e+00 : f32
    %cst_13 = arith.constant 1.000000e+00 : f32
    "tpu.trace_stop"() : () -> ()
    %30 = vector.broadcast %cst_12 : f32 to vector<2x8x32xf32>
    %31 = arith.maximumf %30, %29 : vector<2x8x32xf32>
    %32 = vector.broadcast %cst_13 : f32 to vector<2x8x32xf32>
    %33 = arith.minimumf %32, %31 : vector<2x8x32xf32>
    %34 = vector.extract_strided_slice %8 {offsets = [0, 0, 16], sizes = [2, 8, 16], strides = [1, 1, 1]} : vector<2x8x256xbf16> to vector<2x8x16xbf16>
    %35 = vector.extract_strided_slice %8 {offsets = [0, 0, 80], sizes = [2, 8, 16], strides = [1, 1, 1]} : vector<2x8x256xbf16> to vector<2x8x16xbf16>
    %36 = vector.extract_strided_slice %8 {offsets = [0, 0, 160], sizes = [2, 8, 32], strides = [1, 1, 1]} : vector<2x8x256xbf16> to vector<2x8x32xbf16>
    "tpu.trace_start"() <{level = 10 : i32, message = "bqd,bkd->bqk"}> : () -> ()
    %cst_14 = arith.constant dense<0.000000e+00> : vector<2x8x8xf32>
    %37 = tpu.matmul %34, %35, %cst_14 {dimension_numbers = #tpu.dot_dimension_numbers<[2], [2], [1], [1], [0, 0, 0, 1, 1, 1], [0], [0]>} : vector<2x8x16xbf16>, vector<2x8x16xbf16>, vector<2x8x8xf32> -> vector<2x8x8xf32>
    "tpu.trace_stop"() : () -> ()
    %c1 = arith.constant 1 : index
    %c0_15 = arith.constant 0 : index
    %c0_16 = arith.constant 0 : index
    %38 = vector.load %arg4[%c1, %c0_15, %c0_16] : memref<4x8x8xf32, #tpu.memory_space<vmem>>, vector<1x8x8xf32>
    %39 = vector.shape_cast %38 : vector<1x8x8xf32> to vector<8x8xf32>
    %40 = vector.shape_cast %39 : vector<8x8xf32> to vector<1x8x8xf32>
    %41 = vector.broadcast %40 : vector<1x8x8xf32> to vector<2x8x8xf32>
    %42 = arith.addf %37, %41 : vector<2x8x8xf32>
    %cst_17 = arith.constant dense<0xFF800000> : vector<2x8xf32>
    %43 = vector.multi_reduction <maximumf>, %42, %cst_17 [2] : vector<2x8x8xf32> to vector<2x8xf32>
    %44 = vector.shape_cast %43 : vector<2x8xf32> to vector<2x8x1xf32>
    %45 = vector.broadcast %44 : vector<2x8x1xf32> to vector<2x8x8xf32>
    %46 = arith.subf %42, %45 : vector<2x8x8xf32>
    %47 = math.exp %46 : vector<2x8x8xf32>
    %cst_18 = arith.constant dense<0.000000e+00> : vector<2x8xf32>
    %48 = vector.multi_reduction <add>, %47, %cst_18 [2] : vector<2x8x8xf32> to vector<2x8xf32>
    %49 = vector.shape_cast %48 : vector<2x8xf32> to vector<2x8x1xf32>
    %50 = tpu.reciprocal %49 {approx = true} : vector<2x8x1xf32> -> vector<2x8x1xf32>
    %51 = vector.broadcast %50 : vector<2x8x1xf32> to vector<2x8x8xf32>
    %52 = arith.mulf %47, %51 : vector<2x8x8xf32>
    %53 = arith.truncf %52 : vector<2x8x8xf32> to vector<2x8x8xbf16>
    "tpu.trace_start"() <{level = 10 : i32, message = "bqk,bkd->bqd"}> : () -> ()
    %cst_19 = arith.constant dense<0.000000e+00> : vector<2x8x32xf32>
    %54 = tpu.matmul %53, %36, %cst_19 {dimension_numbers = #tpu.dot_dimension_numbers<[2], [1], [1], [2], [0, 0, 0, 1, 1, 2], [0], [0]>} : vector<2x8x8xbf16>, vector<2x8x32xbf16>, vector<2x8x32xf32> -> vector<2x8x32xf32>
    %cst_20 = arith.constant -1.000000e+00 : f32
    %cst_21 = arith.constant 1.000000e+00 : f32
    "tpu.trace_stop"() : () -> ()
    %55 = vector.broadcast %cst_20 : f32 to vector<2x8x32xf32>
    %56 = arith.maximumf %55, %54 : vector<2x8x32xf32>
    %57 = vector.broadcast %cst_21 : f32 to vector<2x8x32xf32>
    %58 = arith.minimumf %57, %56 : vector<2x8x32xf32>
    %59 = vector.extract_strided_slice %8 {offsets = [0, 0, 32], sizes = [2, 8, 16], strides = [1, 1, 1]} : vector<2x8x256xbf16> to vector<2x8x16xbf16>
    %60 = vector.extract_strided_slice %8 {offsets = [0, 0, 96], sizes = [2, 8, 16], strides = [1, 1, 1]} : vector<2x8x256xbf16> to vector<2x8x16xbf16>
    %61 = vector.extract_strided_slice %8 {offsets = [0, 0, 192], sizes = [2, 8, 32], strides = [1, 1, 1]} : vector<2x8x256xbf16> to vector<2x8x32xbf16>
    "tpu.trace_start"() <{level = 10 : i32, message = "bqd,bkd->bqk"}> : () -> ()
    %cst_22 = arith.constant dense<0.000000e+00> : vector<2x8x8xf32>
    %62 = tpu.matmul %59, %60, %cst_22 {dimension_numbers = #tpu.dot_dimension_numbers<[2], [2], [1], [1], [0, 0, 0, 1, 1, 1], [0], [0]>} : vector<2x8x16xbf16>, vector<2x8x16xbf16>, vector<2x8x8xf32> -> vector<2x8x8xf32>
    "tpu.trace_stop"() : () -> ()
    %c2 = arith.constant 2 : index
    %c0_23 = arith.constant 0 : index
    %c0_24 = arith.constant 0 : index
    %63 = vector.load %arg4[%c2, %c0_23, %c0_24] : memref<4x8x8xf32, #tpu.memory_space<vmem>>, vector<1x8x8xf32>
    %64 = vector.shape_cast %63 : vector<1x8x8xf32> to vector<8x8xf32>
    %65 = vector.shape_cast %64 : vector<8x8xf32> to vector<1x8x8xf32>
    %66 = vector.broadcast %65 : vector<1x8x8xf32> to vector<2x8x8xf32>
    %67 = arith.addf %62, %66 : vector<2x8x8xf32>
    %cst_25 = arith.constant dense<0xFF800000> : vector<2x8xf32>
    %68 = vector.multi_reduction <maximumf>, %67, %cst_25 [2] : vector<2x8x8xf32> to vector<2x8xf32>
    %69 = vector.shape_cast %68 : vector<2x8xf32> to vector<2x8x1xf32>
    %70 = vector.broadcast %69 : vector<2x8x1xf32> to vector<2x8x8xf32>
    %71 = arith.subf %67, %70 : vector<2x8x8xf32>
    %72 = math.exp %71 : vector<2x8x8xf32>
    %cst_26 = arith.constant dense<0.000000e+00> : vector<2x8xf32>
    %73 = vector.multi_reduction <add>, %72, %cst_26 [2] : vector<2x8x8xf32> to vector<2x8xf32>
    %74 = vector.shape_cast %73 : vector<2x8xf32> to vector<2x8x1xf32>
    %75 = tpu.reciprocal %74 {approx = true} : vector<2x8x1xf32> -> vector<2x8x1xf32>
    %76 = vector.broadcast %75 : vector<2x8x1xf32> to vector<2x8x8xf32>
    %77 = arith.mulf %72, %76 : vector<2x8x8xf32>
    %78 = arith.truncf %77 : vector<2x8x8xf32> to vector<2x8x8xbf16>
    "tpu.trace_start"() <{level = 10 : i32, message = "bqk,bkd->bqd"}> : () -> ()
    %cst_27 = arith.constant dense<0.000000e+00> : vector<2x8x32xf32>
    %79 = tpu.matmul %78, %61, %cst_27 {dimension_numbers = #tpu.dot_dimension_numbers<[2], [1], [1], [2], [0, 0, 0, 1, 1, 2], [0], [0]>} : vector<2x8x8xbf16>, vector<2x8x32xbf16>, vector<2x8x32xf32> -> vector<2x8x32xf32>
    %cst_28 = arith.constant -1.000000e+00 : f32
    %cst_29 = arith.constant 1.000000e+00 : f32
    "tpu.trace_stop"() : () -> ()
    %80 = vector.broadcast %cst_28 : f32 to vector<2x8x32xf32>
    %81 = arith.maximumf %80, %79 : vector<2x8x32xf32>
    %82 = vector.broadcast %cst_29 : f32 to vector<2x8x32xf32>
    %83 = arith.minimumf %82, %81 : vector<2x8x32xf32>
    %84 = vector.extract_strided_slice %8 {offsets = [0, 0, 48], sizes = [2, 8, 16], strides = [1, 1, 1]} : vector<2x8x256xbf16> to vector<2x8x16xbf16>
    %85 = vector.extract_strided_slice %8 {offsets = [0, 0, 112], sizes = [2, 8, 16], strides = [1, 1, 1]} : vector<2x8x256xbf16> to vector<2x8x16xbf16>
    %86 = vector.extract_strided_slice %8 {offsets = [0, 0, 224], sizes = [2, 8, 32], strides = [1, 1, 1]} : vector<2x8x256xbf16> to vector<2x8x32xbf16>
    "tpu.trace_start"() <{level = 10 : i32, message = "bqd,bkd->bqk"}> : () -> ()
    %cst_30 = arith.constant dense<0.000000e+00> : vector<2x8x8xf32>
    %87 = tpu.matmul %84, %85, %cst_30 {dimension_numbers = #tpu.dot_dimension_numbers<[2], [2], [1], [1], [0, 0, 0, 1, 1, 1], [0], [0]>} : vector<2x8x16xbf16>, vector<2x8x16xbf16>, vector<2x8x8xf32> -> vector<2x8x8xf32>
    "tpu.trace_stop"() : () -> ()
    %c3 = arith.constant 3 : index
    %c0_31 = arith.constant 0 : index
    %c0_32 = arith.constant 0 : index
    %88 = vector.load %arg4[%c3, %c0_31, %c0_32] : memref<4x8x8xf32, #tpu.memory_space<vmem>>, vector<1x8x8xf32>
    %89 = vector.shape_cast %88 : vector<1x8x8xf32> to vector<8x8xf32>
    %90 = vector.shape_cast %89 : vector<8x8xf32> to vector<1x8x8xf32>
    %91 = vector.broadcast %90 : vector<1x8x8xf32> to vector<2x8x8xf32>
    %92 = arith.addf %87, %91 : vector<2x8x8xf32>
    %cst_33 = arith.constant dense<0xFF800000> : vector<2x8xf32>
    %93 = vector.multi_reduction <maximumf>, %92, %cst_33 [2] : vector<2x8x8xf32> to vector<2x8xf32>
    %94 = vector.shape_cast %93 : vector<2x8xf32> to vector<2x8x1xf32>
    %95 = vector.broadcast %94 : vector<2x8x1xf32> to vector<2x8x8xf32>
    %96 = arith.subf %92, %95 : vector<2x8x8xf32>
    %97 = math.exp %96 : vector<2x8x8xf32>
    %cst_34 = arith.constant dense<0.000000e+00> : vector<2x8xf32>
    %98 = vector.multi_reduction <add>, %97, %cst_34 [2] : vector<2x8x8xf32> to vector<2x8xf32>
    %99 = vector.shape_cast %98 : vector<2x8xf32> to vector<2x8x1xf32>
    %100 = tpu.reciprocal %99 {approx = true} : vector<2x8x1xf32> -> vector<2x8x1xf32>
    %101 = vector.broadcast %100 : vector<2x8x1xf32> to vector<2x8x8xf32>
    %102 = arith.mulf %97, %101 : vector<2x8x8xf32>
    %103 = arith.truncf %102 : vector<2x8x8xf32> to vector<2x8x8xbf16>
    "tpu.trace_start"() <{level = 10 : i32, message = "bqk,bkd->bqd"}> : () -> ()
    %cst_35 = arith.constant dense<0.000000e+00> : vector<2x8x32xf32>
    %104 = tpu.matmul %103, %86, %cst_35 {dimension_numbers = #tpu.dot_dimension_numbers<[2], [1], [1], [2], [0, 0, 0, 1, 1, 2], [0], [0]>} : vector<2x8x8xbf16>, vector<2x8x32xbf16>, vector<2x8x32xf32> -> vector<2x8x32xf32>
    %cst_36 = arith.constant -1.000000e+00 : f32
    %cst_37 = arith.constant 1.000000e+00 : f32
    "tpu.trace_stop"() : () -> ()
    %105 = vector.broadcast %cst_36 : f32 to vector<2x8x32xf32>
    %106 = arith.maximumf %105, %104 : vector<2x8x32xf32>
    %107 = vector.broadcast %cst_37 : f32 to vector<2x8x32xf32>
    %108 = arith.minimumf %107, %106 : vector<2x8x32xf32>
    %109 = tpu.concatenate %33, %58, %83, %108 in 2 : vector<2x8x32xf32>, vector<2x8x32xf32>, vector<2x8x32xf32>, vector<2x8x32xf32> -> vector<2x8x128xf32>
    %110 = vector.shape_cast %109 : vector<2x8x128xf32> to vector<16x128xf32>
    %111 = arith.truncf %110 : vector<16x128xf32> to vector<16x128xbf16>
    %c0_38 = arith.constant 0 : index
    %c0_39 = arith.constant 0 : index
    %112 = vector.load %arg5[%c0_38, %c0_39] : memref<128x32xbf16, #tpu.memory_space<vmem>>, vector<128x32xbf16>
    %cst_40 = arith.constant dense<0.000000e+00> : vector<16x32xf32>
    %113 = tpu.matmul %111, %112, %cst_40 {dimension_numbers = #tpu.dot_dimension_numbers<[1], [0], [0], [1], [0, 0, 1, 1], [], []>} : vector<16x128xbf16>, vector<128x32xbf16>, vector<16x32xf32> -> vector<16x32xf32>
    %c0_41 = arith.constant 0 : index
    %c0_42 = arith.constant 0 : index
    %114 = vector.load %arg6[%c0_41, %c0_42] : memref<1x32xf32, #tpu.memory_space<vmem>>, vector<1x32xf32>
    %115 = vector.broadcast %114 : vector<1x32xf32> to vector<16x32xf32>
    %116 = arith.addf %113, %115 : vector<16x32xf32>
    %117 = arith.addf %0, %116 : vector<16x32xf32>
    %c0_43 = arith.constant 0 : index
    %c0_44 = arith.constant 0 : index
    %118 = vector.load %arg7[%c0_43, %c0_44] : memref<16x32xf32, #tpu.memory_space<vmem>>, vector<16x32xf32>
    tpu.vector_store %arg7[%c0_43, %c0_44], %117 {strides = array<i32>} : memref<16x32xf32, #tpu.memory_space<vmem>>, vector<16x32xf32>,
    return
  }
  func.func @transform_0(%arg0: i32) -> (i32, i32) {
    %c0_i32 = arith.constant 0 : i32
    %c0_i32_0 = arith.constant 0 : i32
    return %arg0, %c0_i32 : i32, i32
  }
  func.func @transform_1(%arg0: i32) -> (i32, i32) {
    %c0_i32 = arith.constant 0 : i32
    %c0_i32_0 = arith.constant 0 : i32
    %c0_i32_1 = arith.constant 0 : i32
    return %c0_i32, %c0_i32_0 : i32, i32
  }
  func.func @transform_2(%arg0: i32) -> (i32, i32) {
    %c0_i32 = arith.constant 0 : i32
    %c0_i32_0 = arith.constant 0 : i32
    %c0_i32_1 = arith.constant 0 : i32
    return %c0_i32, %c0_i32_0 : i32, i32
  }
  func.func @transform_3(%arg0: i32) -> (i32, i32, i32) {
    %c0_i32 = arith.constant 0 : i32
    %c0_i32_0 = arith.constant 0 : i32
    %c0_i32_1 = arith.constant 0 : i32
    %c0_i32_2 = arith.constant 0 : i32
    return %c0_i32, %c0_i32_0, %c0_i32_1 : i32, i32, i32
  }
  func.func @transform_4(%arg0: i32) -> (i32, i32) {
    %c0_i32 = arith.constant 0 : i32
    %c0_i32_0 = arith.constant 0 : i32
    %c0_i32_1 = arith.constant 0 : i32
    return %c0_i32, %c0_i32_0 : i32, i32
  }
  func.func @transform_5(%arg0: i32) -> (i32, i32) {
    %c0_i32 = arith.constant 0 : i32
    %c0_i32_0 = arith.constant 0 : i32
    %c0_i32_1 = arith.constant 0 : i32
    return %c0_i32, %c0_i32_0 : i32, i32
  }
  func.func @transform_6(%arg0: i32) -> (i32, i32) {
    %c0_i32 = arith.constant 0 : i32
    %c0_i32_0 = arith.constant 0 : i32
    return %arg0, %c0_i32 : i32, i32
  }
}

</mosaic_0001>

<llo_original>
// kernel: tpu_custom_call.1
$region0: #{tpu_custom_call.1}
  #allocation0 [shape = 'u32[]', space=smem, size = 0x4, offset = 0x4, fixed_abs, tag = 'smem constant byte address 0x4 - core index']
  #allocation1 [shape = 'u32[144,128]{1,0:T(1,128)}', space=vmem, size = 0x12000, scoped, tag = 'internal scratch']
  %s0 = inlined_call_operand.vmem [shape: f32[16,32], index: 0, kind: input, shape index: {}]
  %s1 = inlined_call_operand.vmem [shape: bf16[32,256], index: 1, kind: input, shape index: {}]
  %s2 = inlined_call_operand.vmem [shape: f32[1,256], index: 2, kind: input, shape index: {}]
  %s3 = inlined_call_operand.vmem [shape: f32[4,8,8], index: 3, kind: input, shape index: {}]
  %s4 = inlined_call_operand.vmem [shape: bf16[128,32], index: 4, kind: input, shape index: {}]
  %s5 = inlined_call_operand.vmem [shape: f32[1,32], index: 5, kind: input, shape index: {}]
  %s6 = inlined_call_operand.hbm [shape: f32[16,32], index: 6, kind: output, shape index: {}]
  %s7 = sld [smem:[#allocation0]]
  $region34: #{tpu_custom_call.1} parent=0
    _
  %s9 = ssub.s32 1, %s7
  %s10 = scalar_select 0, %s9, %s7
  $region1: #{tpu_custom_call.1} parent=0
    #allocation2 [shape = 'u8[8192]{0}', space=vmem, size = 0x2000, scoped, tag = 'output window, operand 0, single buffered']
    #allocation3 [shape = 's32[1]{0}', space=sflag, size = 0x4, scoped, tag = 'scoped memory for tpu_custom_call.1']
    %11 = vsyncpa [#allocation3], 0
    // Predicated region
    $region2: #{tpu_custom_call.1} parent=1 // pred_check
      _
    $region3: #{tpu_custom_call.1} parent=1 // pred_check_branch
      %13 = sbr.rel (0) target = $region5
    $region4: #{tpu_custom_call.1} parent=1 // pred_region
      _
    $region5: #{tpu_custom_call.1} parent=1 // pred_fallthru
      _
    // Predicated region
    $region6: #{tpu_custom_call.1} parent=1 // pred_check
      _
    $region7: #{tpu_custom_call.1} parent=1 // pred_check_branch
      %15 = sbr.rel (0) target = $region9
    $region8: #{tpu_custom_call.1} parent=1 // pred_region
      _
    $region9: #{tpu_custom_call.1} parent=1 // pred_fallthru
      _
    // Predicated region
    $region10: #{tpu_custom_call.1} parent=1 // pred_check
      _
    $region11: #{tpu_custom_call.1} parent=1 // pred_check_branch
      %17 = sbr.rel (0) target = $region13
    $region12: #{tpu_custom_call.1} parent=1 // pred_region
      _
    $region13: #{tpu_custom_call.1} parent=1 // pred_fallthru
      _
    // Predicated region
    $region14: #{tpu_custom_call.1} parent=1 // pred_check
      _
    $region15: #{tpu_custom_call.1} parent=1 // pred_check_branch
      %19 = sbr.rel (0) target = $region17
    $region16: #{tpu_custom_call.1} parent=1 // pred_region
      _
    $region17: #{tpu_custom_call.1} parent=1 // pred_fallthru
      _
    // Predicated region
    $region18: #{tpu_custom_call.1} parent=1 // pred_check
      _
    $region19: #{tpu_custom_call.1} parent=1 // pred_check_branch
      %21 = sbr.rel (0) target = $region21
    $region20: #{tpu_custom_call.1} parent=1 // pred_region
      _
    $region21: #{tpu_custom_call.1} parent=1 // pred_fallthru
      _
    // Predicated region
    $region22: #{tpu_custom_call.1} parent=1 // pred_check
      _
    $region23: #{tpu_custom_call.1} parent=1 // pred_check_branch
      %23 = sbr.rel (0) target = $region25
    $region24: #{tpu_custom_call.1} parent=1 // pred_region
      _
    $region25: #{tpu_custom_call.1} parent=1 // pred_fallthru
      _
    %v25 = vld [vmem:[%s0] sm:$0xff]
    %v26 = vld [vmem:[%s0 + $0x8] sm:$0xff]
    %v27 = vpack.c.bf16 %v26, %v25
    %v28 = vld [vmem:[%s1] sm:$0xff]
    %v29 = vld [vmem:[%s1 + $0x8] sm:$0xff]
    %v30 = vld [vmem:[%s1 + $0x10] sm:$0xff]
    %v31 = vld [vmem:[%s1 + $0x18] sm:$0xff]
    %v32 = vld [vmem:[%s2] sm:$0x3]
    %v34 = vlaneseq
    %v35 = vshrl.u32 %v34, 7
    %v36 = vsub.s32 0, %v35
    %v37 = vrot.slane %v32, %v36
    %v38 = vlaneseq
    %v39 = vshrl.u32 %v38, 7
    %v40 = vsub.s32 1, %v39
    %v41 = vrot.slane %v32, %v40
    %v48 = vunpack.c.l.b16 %v28
    %v49 = vunpack.c.h.b16 %v28
    %v50 = vunpack.c.l.b16 %v29
    %v51 = vunpack.c.h.b16 %v29
    %v52 = vunpack.c.l.b16 %v30
    %v53 = vunpack.c.h.b16 %v30
    %v54 = vunpack.c.l.b16 %v31
    %v55 = vunpack.c.h.b16 %v31
    %v56 = vpack.c.b16 %v50, %v48
    %v57 = vpack.c.b16 %v51, %v49
    %v58 = vpack.c.b16 %v54, %v52
    %v59 = vpack.c.b16 %v55, %v53
    %vm64 = vcmask 261120
    %v66 = vsel %vm64, %v27, 0
    %68 = vmatprep.subr.bf16.mxu0 0
    %69 = vmatpush1.bf16.msra.mxu0 0
    %70 = vmatprep.subr.bf16.mxu0 0
    %71 = vmatpush1.bf16.msra.mxu0 0
    %72 = vmatprep.subr.bf16.mxu0 0
    %73 = vmatpush1.bf16.msra.mxu0 0
    %74 = vmatprep.subr.bf16.mxu0 0
    %75 = vmatpush1.bf16.msra.mxu0 0
    %76 = vmatprep.subr.bf16.mxu0 0
    %77 = vmatpush1.bf16.msra.mxu0 0
    %78 = vmatprep.subr.bf16.mxu0 0
    %79 = vmatpush1.bf16.msra.mxu0 0
    %80 = vmatprep.subr.bf16.mxu0 %v59
    %81 = vmatpush1.bf16.msra.mxu0 %v58
    %82 = vmatprep.subr.bf16.mxu0 %v57
    %83 = vmatpush1.bf16.msra.mxu0 %v56
    %84 = vmatprep.subr.bf16.mxu0 0
    %85 = vmatpush2.bf16.msra.mxu0 0
    %86 = vmatprep.subr.bf16.mxu0 0
    %87 = vmatpush2.bf16.msra.mxu0 0
    %88 = vmatprep.subr.bf16.mxu0 0
    %89 = vmatpush2.bf16.msra.mxu0 0
    %90 = vmatprep.subr.bf16.mxu0 0
    %91 = vmatpush2.bf16.msra.mxu0 0
    %92 = vmatprep.subr.bf16.mxu0 0
    %93 = vmatpush2.bf16.msra.mxu0 0
    %94 = vmatprep.subr.bf16.mxu0 0
    %95 = vmatpush2.bf16.msra.mxu0 0
    %96 = vmatprep.subr.bf16.mxu0 0
    %97 = vmatpush2.bf16.msra.mxu0 0
    %98 = vmatprep.subr.bf16.mxu0 0
    %99 = vmatpush2.bf16.msra.mxu0 0
    %100 = vmatprep.mubr.bf16.mxu0 0
    %101 = vmatmul.mubr.bf16.gmra.mxu0 %v66
    %v102 = vpop.f32.mrf.mxu0
    %v103 = vadd.f32 %v37, %v102
    %v104 = vpop.f32.mrf.mxu0
    %v105 = vadd.f32 %v41, %v104
    %v106 = vpop.f32.mrf.mxu0
    %v107 = vadd.f32 %v37, %v106
    %v108 = vpop.f32.mrf.mxu0
    %v109 = vadd.f32 %v41, %v108
    %110 = vdwg.mxu0
    %v111 = vpack.c.bf16 %v107, %v103
    %v112 = vpack.c.bf16 %v109, %v105
    %v115 = vunpack.c.l.b16 %v111
    %v116 = vunpack.c.l.b16 %v112
    %v117 = vunpack.c.h.b16 %v111
    %v118 = vunpack.c.h.b16 %v112
    %v119 = vpack.c.b16 %v116, %v115
    %v120 = vpack.c.b16 %v118, %v117
    %v121 = vld [vmem:[%s3] sm:$0xff]
    %v122 = vpack.c.b16 %v115, %v115
    %123 = vrot.lane.b32.xlu0 %v122, 64
    %v124 = vpop.permute.xlu0 %123
    %vm125 = vcmask 130048
    %v127 = vsel %vm125, %v119, 0
    %v130 = vsel %vm125, %v124, 0
    %132 = vmatprep.subr.bf16.mxu0 0
    %133 = vmatpush1.bf16.xpose.msra.mxu0 0
    %134 = vmatprep.subr.bf16.mxu0 0
    %135 = vmatpush1.bf16.xpose.msra.mxu0 0
    %136 = vmatprep.subr.bf16.mxu0 0
    %137 = vmatpush1.bf16.xpose.msra.mxu0 0
    %138 = vmatprep.subr.bf16.mxu0 0
    %139 = vmatpush1.bf16.xpose.msra.mxu0 0
    %140 = vmatprep.subr.bf16.mxu0 0
    %141 = vmatpush1.bf16.xpose.msra.mxu0 0
    %142 = vmatprep.subr.bf16.mxu0 0
    %143 = vmatpush1.bf16.xpose.msra.mxu0 0
    %144 = vmatprep.subr.bf16.mxu0 0
    %145 = vmatpush1.bf16.xpose.msra.mxu0 0
    %146 = vmatprep.subr.bf16.mxu0 0
    %147 = vmatpush1.bf16.xpose.msra.mxu0 %v130
    %148 = vmatprep.subr.bf16.mxu0 0
    %149 = vmatpush2.bf16.xpose.msra.mxu0 0
    %150 = vmatprep.subr.bf16.mxu0 0
    %151 = vmatpush2.bf16.xpose.msra.mxu0 0
    %152 = vmatprep.subr.bf16.mxu0 0
    %153 = vmatpush2.bf16.xpose.msra.mxu0 0
    %154 = vmatprep.subr.bf16.mxu0 0
    %155 = vmatpush2.bf16.xpose.msra.mxu0 0
    %156 = vmatprep.subr.bf16.mxu0 0
    %157 = vmatpush2.bf16.xpose.msra.mxu0 0
    %158 = vmatprep.subr.bf16.mxu0 0
    %159 = vmatpush2.bf16.xpose.msra.mxu0 0
    %160 = vmatprep.subr.bf16.mxu0 0
    %161 = vmatpush2.bf16.xpose.msra.mxu0 0
    %162 = vmatprep.subr.bf16.mxu0 0
    %163 = vmatpush2.bf16.xpose.msra.mxu0 0
    %164 = vmatprep.mubr.bf16.mxu0 0
    %165 = vmatmul.mubr.bf16.gmra.mxu0 %v127
    %v166 = vpop.f32.mrf.mxu0
    %v167 = vadd.f32 %v121, %v166
    %v168 = vpop.f32.mrf.mxu0
    %v169 = vpop.f32.mrf.mxu0
    %v170 = vpop.f32.mrf.mxu0
    %171 = vdwg.mxu0
    %v172 = vpack.c.b16 %v117, %v117
    %173 = vrot.lane.b32.xlu0 %v172, 64
    %v174 = vpop.permute.xlu0 %173
    %v176 = vsel %vm125, %v120, 0
    %v179 = vsel %vm125, %v174, 0
    %181 = vmatprep.subr.bf16.mxu0 0
    %182 = vmatpush1.bf16.xpose.msra.mxu0 0
    %183 = vmatprep.subr.bf16.mxu0 0
    %184 = vmatpush1.bf16.xpose.msra.mxu0 0
    %185 = vmatprep.subr.bf16.mxu0 0
    %186 = vmatpush1.bf16.xpose.msra.mxu0 0
    %187 = vmatprep.subr.bf16.mxu0 0
    %188 = vmatpush1.bf16.xpose.msra.mxu0 0
    %189 = vmatprep.subr.bf16.mxu0 0
    %190 = vmatpush1.bf16.xpose.msra.mxu0 0
    %191 = vmatprep.subr.bf16.mxu0 0
    %192 = vmatpush1.bf16.xpose.msra.mxu0 0
    %193 = vmatprep.subr.bf16.mxu0 0
    %194 = vmatpush1.bf16.xpose.msra.mxu0 0
    %195 = vmatprep.subr.bf16.mxu0 0
    %196 = vmatpush1.bf16.xpose.msra.mxu0 %v179
    %197 = vmatprep.subr.bf16.mxu0 0
    %198 = vmatpush2.bf16.xpose.msra.mxu0 0
    %199 = vmatprep.subr.bf16.mxu0 0
    %200 = vmatpush2.bf16.xpose.msra.mxu0 0
    %201 = vmatprep.subr.bf16.mxu0 0
    %202 = vmatpush2.bf16.xpose.msra.mxu0 0
    %203 = vmatprep.subr.bf16.mxu0 0
    %204 = vmatpush2.bf16.xpose.msra.mxu0 0
    %205 = vmatprep.subr.bf16.mxu0 0
    %206 = vmatpush2.bf16.xpose.msra.mxu0 0
    %207 = vmatprep.subr.bf16.mxu0 0
    %208 = vmatpush2.bf16.xpose.msra.mxu0 0
    %209 = vmatprep.subr.bf16.mxu0 0
    %210 = vmatpush2.bf16.xpose.msra.mxu0 0
    %211 = vmatprep.subr.bf16.mxu0 0
    %212 = vmatpush2.bf16.xpose.msra.mxu0 0
    %213 = vmatprep.mubr.bf16.mxu0 0
    %214 = vmatmul.mubr.bf16.gmra.mxu0 %v176
    %v215 = vpop.f32.mrf.mxu0
    %v216 = vadd.f32 %v121, %v215
    %v217 = vpop.f32.mrf.mxu0
    %v218 = vpop.f32.mrf.mxu0
    %v219 = vpop.f32.mrf.mxu0
    %220 = vdwg.mxu0
    %vm221 = vcmask 64512
    %v222 = vsel %vm221, %v167, -inf
    %223 = vmax.xlane.f32.xlu0 %v222
    %v224 = vpop.xlane.xlu0 %223
    %v225 = vsel %vm221, %v216, -inf
    %226 = vmax.xlane.f32.xlu0 %v225
    %v227 = vpop.xlane.xlu0 %226
    %v228 = vsub.f32 %v167, %v224
    %v229 = vsub.f32 %v216, %v227
    %v230 = vmul.f32 %v228, 1.442695
    %v231 = vpow.pop %v230
    %v232 = vmul.f32 %v229, 1.442695
    %v233 = vpow.pop %v232
    %v234 = vsel %vm221, %v231, 0.0
    %235 = vadd.xlane.f32.xlu0 %v234
    %v236 = vpop.xlane.xlu0 %235
    %v237 = vsel %vm221, %v233, 0.0
    %238 = vadd.xlane.f32.xlu0 %v237
    %v239 = vpop.xlane.xlu0 %238
    %v240 = vrcp.pop %v236
    %v241 = vrcp.pop %v239
    %v242 = vmul.f32 %v231, %v240
    %v243 = vmul.f32 %v233, %v241
    %v244 = vpack.c.bf16 %v242, %v242
    %v245 = vpack.c.bf16 %v243, %v243
    %v246 = vrot.slane %v119, 4
    %v248 = vsel %vm221, %v244, 0
    %vm250 = vcmask 1043456
    %v252 = vsel %vm250, %v246, 0
    %254 = vmatprep.subr.bf16.mxu0 0
    %255 = vmatpush1.bf16.msra.mxu0 0
    %256 = vmatprep.subr.bf16.mxu0 0
    %257 = vmatpush1.bf16.msra.mxu0 0
    %258 = vmatprep.subr.bf16.mxu0 0
    %259 = vmatpush1.bf16.msra.mxu0 0
    %260 = vmatprep.subr.bf16.mxu0 0
    %261 = vmatpush1.bf16.msra.mxu0 0
    %262 = vmatprep.subr.bf16.mxu0 0
    %263 = vmatpush1.bf16.msra.mxu0 0
    %264 = vmatprep.subr.bf16.mxu0 0
    %265 = vmatpush1.bf16.msra.mxu0 0
    %266 = vmatprep.subr.bf16.mxu0 0
    %267 = vmatpush1.bf16.msra.mxu0 0
    %268 = vmatprep.subr.bf16.mxu0 0
    %269 = vmatpush1.bf16.msra.mxu0 %v252
    %270 = vmatprep.subr.bf16.mxu0 0
    %271 = vmatpush2.bf16.msra.mxu0 0
    %272 = vmatprep.subr.bf16.mxu0 0
    %273 = vmatpush2.bf16.msra.mxu0 0
    %274 = vmatprep.subr.bf16.mxu0 0
    %275 = vmatpush2.bf16.msra.mxu0 0
    %276 = vmatprep.subr.bf16.mxu0 0
    %277 = vmatpush2.bf16.msra.mxu0 0
    %278 = vmatprep.subr.bf16.mxu0 0
    %279 = vmatpush2.bf16.msra.mxu0 0
    %280 = vmatprep.subr.bf16.mxu0 0
    %281 = vmatpush2.bf16.msra.mxu0 0
    %282 = vmatprep.subr.bf16.mxu0 0
    %283 = vmatpush2.bf16.msra.mxu0 0
    %284 = vmatprep.subr.bf16.mxu0 0
    %285 = vmatpush2.bf16.msra.mxu0 0
    %286 = vmatprep.mubr.bf16.mxu0 0
    %287 = vmatmul.mubr.bf16.gmra.mxu0 %v248
    %v288 = vpop.f32.mrf.mxu0
    %v289 = vadd.f32 0.0, %v288
    %v290 = vpop.f32.mrf.mxu0
    %v291 = vpop.f32.mrf.mxu0
    %v292 = vpop.f32.mrf.mxu0
    %293 = vdwg.mxu0
    %v294 = vrot.slane %v120, 4
    %v296 = vsel %vm221, %v245, 0
    %v299 = vsel %vm250, %v294, 0
    %301 = vmatprep.subr.bf16.mxu0 0
    %302 = vmatpush1.bf16.msra.mxu0 0
    %303 = vmatprep.subr.bf16.mxu0 0
    %304 = vmatpush1.bf16.msra.mxu0 0
    %305 = vmatprep.subr.bf16.mxu0 0
    %306 = vmatpush1.bf16.msra.mxu0 0
    %307 = vmatprep.subr.bf16.mxu0 0
    %308 = vmatpush1.bf16.msra.mxu0 0
    %309 = vmatprep.subr.bf16.mxu0 0
    %310 = vmatpush1.bf16.msra.mxu0 0
    %311 = vmatprep.subr.bf16.mxu0 0
    %312 = vmatpush1.bf16.msra.mxu0 0
    %313 = vmatprep.subr.bf16.mxu0 0
    %314 = vmatpush1.bf16.msra.mxu0 0
    %315 = vmatprep.subr.bf16.mxu0 0
    %316 = vmatpush1.bf16.msra.mxu0 %v299
    %317 = vmatprep.subr.bf16.mxu0 0
    %318 = vmatpush2.bf16.msra.mxu0 0
    %319 = vmatprep.subr.bf16.mxu0 0
    %320 = vmatpush2.bf16.msra.mxu0 0
    %321 = vmatprep.subr.bf16.mxu0 0
    %322 = vmatpush2.bf16.msra.mxu0 0
    %323 = vmatprep.subr.bf16.mxu0 0
    %324 = vmatpush2.bf16.msra.mxu0 0
    %325 = vmatprep.subr.bf16.mxu0 0
    %326 = vmatpush2.bf16.msra.mxu0 0
    %327 = vmatprep.subr.bf16.mxu0 0
    %328 = vmatpush2.bf16.msra.mxu0 0
    %329 = vmatprep.subr.bf16.mxu0 0
    %330 = vmatpush2.bf16.msra.mxu0 0
    %331 = vmatprep.subr.bf16.mxu0 0
    %332 = vmatpush2.bf16.msra.mxu0 0
    %333 = vmatprep.mubr.bf16.mxu0 0
    %334 = vmatmul.mubr.bf16.gmra.mxu0 %v296
    %v335 = vpop.f32.mrf.mxu0
    %v336 = vadd.f32 0.0, %v335
    %v337 = vpop.f32.mrf.mxu0
    %v338 = vpop.f32.mrf.mxu0
    %v339 = vpop.f32.mrf.mxu0
    %340 = vdwg.mxu0
    %v341 = vmax.f32 %v289, -1.0
    %v342 = vmax.f32 %v336, -1.0
    %v343 = vmin.f32 %v341, 1.0
    %v344 = vmin.f32 %v342, 1.0
    %s345 = scalar_lea.vmem %s3, 8
    %v346 = vld [vmem:[%s345] sm:$0xff]
    %347 = vrot.lane.b32.xlu0 %v122, 112
    %v348 = vpop.permute.xlu0 %347
    %349 = vrot.lane.b32.xlu0 %v122, 48
    %v350 = vpop.permute.xlu0 %349
    %v352 = vsel %vm125, %v348, 0
    %v355 = vsel %vm125, %v350, 0
    %357 = vmatprep.subr.bf16.mxu0 0
    %358 = vmatpush1.bf16.xpose.msra.mxu0 0
    %359 = vmatprep.subr.bf16.mxu0 0
    %360 = vmatpush1.bf16.xpose.msra.mxu0 0
    %361 = vmatprep.subr.bf16.mxu0 0
    %362 = vmatpush1.bf16.xpose.msra.mxu0 0
    %363 = vmatprep.subr.bf16.mxu0 0
    %364 = vmatpush1.bf16.xpose.msra.mxu0 0
    %365 = vmatprep.subr.bf16.mxu0 0
    %366 = vmatpush1.bf16.xpose.msra.mxu0 0
    %367 = vmatprep.subr.bf16.mxu0 0
    %368 = vmatpush1.bf16.xpose.msra.mxu0 0
    %369 = vmatprep.subr.bf16.mxu0 0
    %370 = vmatpush1.bf16.xpose.msra.mxu0 0
    %371 = vmatprep.subr.bf16.mxu0 0
    %372 = vmatpush1.bf16.xpose.msra.mxu0 %v355
    %373 = vmatprep.subr.bf16.mxu0 0
    %374 = vmatpush2.bf16.xpose.msra.mxu0 0
    %375 = vmatprep.subr.bf16.mxu0 0
    %376 = vmatpush2.bf16.xpose.msra.mxu0 0
    %377 = vmatprep.subr.bf16.mxu0 0
    %378 = vmatpush2.bf16.xpose.msra.mxu0 0
    %379 = vmatprep.subr.bf16.mxu0 0
    %380 = vmatpush2.bf16.xpose.msra.mxu0 0
    %381 = vmatprep.subr.bf16.mxu0 0
    %382 = vmatpush2.bf16.xpose.msra.mxu0 0
    %383 = vmatprep.subr.bf16.mxu0 0
    %384 = vmatpush2.bf16.xpose.msra.mxu0 0
    %385 = vmatprep.subr.bf16.mxu0 0
    %386 = vmatpush2.bf16.xpose.msra.mxu0 0
    %387 = vmatprep.subr.bf16.mxu0 0
    %388 = vmatpush2.bf16.xpose.msra.mxu0 0
    %389 = vmatprep.mubr.bf16.mxu0 0
    %390 = vmatmul.mubr.bf16.gmra.mxu0 %v352
    %v391 = vpop.f32.mrf.mxu0
    %v392 = vadd.f32 %v346, %v391
    %v393 = vpop.f32.mrf.mxu0
    %v394 = vpop.f32.mrf.mxu0
    %v395 = vpop.f32.mrf.mxu0
    %396 = vdwg.mxu0
    %397 = vrot.lane.b32.xlu0 %v172, 112
    %v398 = vpop.permute.xlu0 %397
    %399 = vrot.lane.b32.xlu0 %v172, 48
    %v400 = vpop.permute.xlu0 %399
    %v402 = vsel %vm125, %v398, 0
    %v405 = vsel %vm125, %v400, 0
    %407 = vmatprep.subr.bf16.mxu0 0
    %408 = vmatpush1.bf16.xpose.msra.mxu0 0
    %409 = vmatprep.subr.bf16.mxu0 0
    %410 = vmatpush1.bf16.xpose.msra.mxu0 0
    %411 = vmatprep.subr.bf16.mxu0 0
    %412 = vmatpush1.bf16.xpose.msra.mxu0 0
    %413 = vmatprep.subr.bf16.mxu0 0
    %414 = vmatpush1.bf16.xpose.msra.mxu0 0
    %415 = vmatprep.subr.bf16.mxu0 0
    %416 = vmatpush1.bf16.xpose.msra.mxu0 0
    %417 = vmatprep.subr.bf16.mxu0 0
    %418 = vmatpush1.bf16.xpose.msra.mxu0 0
    %419 = vmatprep.subr.bf16.mxu0 0
    %420 = vmatpush1.bf16.xpose.msra.mxu0 0
    %421 = vmatprep.subr.bf16.mxu0 0
    %422 = vmatpush1.bf16.xpose.msra.mxu0 %v405
    %423 = vmatprep.subr.bf16.mxu0 0
    %424 = vmatpush2.bf16.xpose.msra.mxu0 0
    %425 = vmatprep.subr.bf16.mxu0 0
    %426 = vmatpush2.bf16.xpose.msra.mxu0 0
    %427 = vmatprep.subr.bf16.mxu0 0
    %428 = vmatpush2.bf16.xpose.msra.mxu0 0
    %429 = vmatprep.subr.bf16.mxu0 0
    %430 = vmatpush2.bf16.xpose.msra.mxu0 0
    %431 = vmatprep.subr.bf16.mxu0 0
    %432 = vmatpush2.bf16.xpose.msra.mxu0 0
    %433 = vmatprep.subr.bf16.mxu0 0
    %434 = vmatpush2.bf16.xpose.msra.mxu0 0
    %435 = vmatprep.subr.bf16.mxu0 0
    %436 = vmatpush2.bf16.xpose.msra.mxu0 0
    %437 = vmatprep.subr.bf16.mxu0 0
    %438 = vmatpush2.bf16.xpose.msra.mxu0 0
    %439 = vmatprep.mubr.bf16.mxu0 0
    %440 = vmatmul.mubr.bf16.gmra.mxu0 %v402
    %v441 = vpop.f32.mrf.mxu0
    %v442 = vadd.f32 %v346, %v441
    %v443 = vpop.f32.mrf.mxu0
    %v444 = vpop.f32.mrf.mxu0
    %v445 = vpop.f32.mrf.mxu0
    %446 = vdwg.mxu0
    %v447 = vsel %vm221, %v392, -inf
    %448 = vmax.xlane.f32.xlu0 %v447
    %v449 = vpop.xlane.xlu0 %448
    %v450 = vsel %vm221, %v442, -inf
    %451 = vmax.xlane.f32.xlu0 %v450
    %v452 = vpop.xlane.xlu0 %451
    %v453 = vsub.f32 %v392, %v449
    %v454 = vsub.f32 %v442, %v452
    %v455 = vmul.f32 %v453, 1.442695
    %v456 = vpow.pop %v455
    %v457 = vmul.f32 %v454, 1.442695
    %v458 = vpow.pop %v457
    %v459 = vsel %vm221, %v456, 0.0
    %460 = vadd.xlane.f32.xlu0 %v459
    %v461 = vpop.xlane.xlu0 %460
    %v462 = vsel %vm221, %v458, 0.0
    %463 = vadd.xlane.f32.xlu0 %v462
    %v464 = vpop.xlane.xlu0 %463
    %v465 = vrcp.pop %v461
    %v466 = vrcp.pop %v464
    %v467 = vmul.f32 %v456, %v465
    %v468 = vmul.f32 %v458, %v466
    %v469 = vpack.c.bf16 %v467, %v467
    %v470 = vpack.c.bf16 %v468, %v468
    %471 = vrot.lane.b32.xlu0 %v119, 96
    %v472 = vpop.permute.xlu0 %471
    %v473 = vrot.slane %v472, 4
    %v475 = vsel %vm221, %v469, 0
    %v478 = vsel %vm250, %v473, 0
    %480 = vmatprep.subr.bf16.mxu0 0
    %481 = vmatpush1.bf16.msra.mxu0 0
    %482 = vmatprep.subr.bf16.mxu0 0
    %483 = vmatpush1.bf16.msra.mxu0 0
    %484 = vmatprep.subr.bf16.mxu0 0
    %485 = vmatpush1.bf16.msra.mxu0 0
    %486 = vmatprep.subr.bf16.mxu0 0
    %487 = vmatpush1.bf16.msra.mxu0 0
    %488 = vmatprep.subr.bf16.mxu0 0
    %489 = vmatpush1.bf16.msra.mxu0 0
    %490 = vmatprep.subr.bf16.mxu0 0
    %491 = vmatpush1.bf16.msra.mxu0 0
    %492 = vmatprep.subr.bf16.mxu0 0
    %493 = vmatpush1.bf16.msra.mxu0 0
    %494 = vmatprep.subr.bf16.mxu0 0
    %495 = vmatpush1.bf16.msra.mxu0 %v478
    %496 = vmatprep.subr.bf16.mxu0 0
    %497 = vmatpush2.bf16.msra.mxu0 0
    %498 = vmatprep.subr.bf16.mxu0 0
    %499 = vmatpush2.bf16.msra.mxu0 0
    %500 = vmatprep.subr.bf16.mxu0 0
    %501 = vmatpush2.bf16.msra.mxu0 0
    %502 = vmatprep.subr.bf16.mxu0 0
    %503 = vmatpush2.bf16.msra.mxu0 0
    %504 = vmatprep.subr.bf16.mxu0 0
    %505 = vmatpush2.bf16.msra.mxu0 0
    %506 = vmatprep.subr.bf16.mxu0 0
    %507 = vmatpush2.bf16.msra.mxu0 0
    %508 = vmatprep.subr.bf16.mxu0 0
    %509 = vmatpush2.bf16.msra.mxu0 0
    %510 = vmatprep.subr.bf16.mxu0 0
    %511 = vmatpush2.bf16.msra.mxu0 0
    %512 = vmatprep.mubr.bf16.mxu0 0
    %513 = vmatmul.mubr.bf16.gmra.mxu0 %v475
    %v514 = vpop.f32.mrf.mxu0
    %v515 = vadd.f32 0.0, %v514
    %v516 = vpop.f32.mrf.mxu0
    %v517 = vpop.f32.mrf.mxu0
    %v518 = vpop.f32.mrf.mxu0
    %519 = vdwg.mxu0
    %520 = vrot.lane.b32.xlu0 %v120, 96
    %v521 = vpop.permute.xlu0 %520
    %v522 = vrot.slane %v521, 4
    %v524 = vsel %vm221, %v470, 0
    %v527 = vsel %vm250, %v522, 0
    %529 = vmatprep.subr.bf16.mxu0 0
    %530 = vmatpush1.bf16.msra.mxu0 0
    %531 = vmatprep.subr.bf16.mxu0 0
    %532 = vmatpush1.bf16.msra.mxu0 0
    %533 = vmatprep.subr.bf16.mxu0 0
    %534 = vmatpush1.bf16.msra.mxu0 0
    %535 = vmatprep.subr.bf16.mxu0 0
    %536 = vmatpush1.bf16.msra.mxu0 0
    %537 = vmatprep.subr.bf16.mxu0 0
    %538 = vmatpush1.bf16.msra.mxu0 0
    %539 = vmatprep.subr.bf16.mxu0 0
    %540 = vmatpush1.bf16.msra.mxu0 0
    %541 = vmatprep.subr.bf16.mxu0 0
    %542 = vmatpush1.bf16.msra.mxu0 0
    %543 = vmatprep.subr.bf16.mxu0 0
    %544 = vmatpush1.bf16.msra.mxu0 %v527
    %545 = vmatprep.subr.bf16.mxu0 0
    %546 = vmatpush2.bf16.msra.mxu0 0
    %547 = vmatprep.subr.bf16.mxu0 0
    %548 = vmatpush2.bf16.msra.mxu0 0
    %549 = vmatprep.subr.bf16.mxu0 0
    %550 = vmatpush2.bf16.msra.mxu0 0
    %551 = vmatprep.subr.bf16.mxu0 0
    %552 = vmatpush2.bf16.msra.mxu0 0
    %553 = vmatprep.subr.bf16.mxu0 0
    %554 = vmatpush2.bf16.msra.mxu0 0
    %555 = vmatprep.subr.bf16.mxu0 0
    %556 = vmatpush2.bf16.msra.mxu0 0
    %557 = vmatprep.subr.bf16.mxu0 0
    %558 = vmatpush2.bf16.msra.mxu0 0
    %559 = vmatprep.subr.bf16.mxu0 0
    %560 = vmatpush2.bf16.msra.mxu0 0
    %561 = vmatprep.mubr.bf16.mxu0 0
    %562 = vmatmul.mubr.bf16.gmra.mxu0 %v524
    %v563 = vpop.f32.mrf.mxu0
    %v564 = vadd.f32 0.0, %v563
    %v565 = vpop.f32.mrf.mxu0
    %v566 = vpop.f32.mrf.mxu0
    %v567 = vpop.f32.mrf.mxu0
    %568 = vdwg.mxu0
    %v569 = vmax.f32 %v515, -1.0
    %v570 = vmax.f32 %v564, -1.0
    %v571 = vmin.f32 %v569, 1.0
    %v572 = vmin.f32 %v570, 1.0
    %s573 = scalar_lea.vmem %s3, 16
    %v574 = vld [vmem:[%s573] sm:$0xff]
    %575 = vrot.lane.b32.xlu0 %v122, 96
    %v576 = vpop.permute.xlu0 %575
    %577 = vrot.lane.b32.xlu0 %v122, 32
    %v578 = vpop.permute.xlu0 %577
    %v580 = vsel %vm125, %v576, 0
    %v583 = vsel %vm125, %v578, 0
    %585 = vmatprep.subr.bf16.mxu0 0
    %586 = vmatpush1.bf16.xpose.msra.mxu0 0
    %587 = vmatprep.subr.bf16.mxu0 0
    %588 = vmatpush1.bf16.xpose.msra.mxu0 0
    %589 = vmatprep.subr.bf16.mxu0 0
    %590 = vmatpush1.bf16.xpose.msra.mxu0 0
    %591 = vmatprep.subr.bf16.mxu0 0
    %592 = vmatpush1.bf16.xpose.msra.mxu0 0
    %593 = vmatprep.subr.bf16.mxu0 0
    %594 = vmatpush1.bf16.xpose.msra.mxu0 0
    %595 = vmatprep.subr.bf16.mxu0 0
    %596 = vmatpush1.bf16.xpose.msra.mxu0 0
    %597 = vmatprep.subr.bf16.mxu0 0
    %598 = vmatpush1.bf16.xpose.msra.mxu0 0
    %599 = vmatprep.subr.bf16.mxu0 0
    %600 = vmatpush1.bf16.xpose.msra.mxu0 %v583
    %601 = vmatprep.subr.bf16.mxu0 0
    %602 = vmatpush2.bf16.xpose.msra.mxu0 0
    %603 = vmatprep.subr.bf16.mxu0 0
    %604 = vmatpush2.bf16.xpose.msra.mxu0 0
    %605 = vmatprep.subr.bf16.mxu0 0
    %606 = vmatpush2.bf16.xpose.msra.mxu0 0
    %607 = vmatprep.subr.bf16.mxu0 0
    %608 = vmatpush2.bf16.xpose.msra.mxu0 0
    %609 = vmatprep.subr.bf16.mxu0 0
    %610 = vmatpush2.bf16.xpose.msra.mxu0 0
    %611 = vmatprep.subr.bf16.mxu0 0
    %612 = vmatpush2.bf16.xpose.msra.mxu0 0
    %613 = vmatprep.subr.bf16.mxu0 0
    %614 = vmatpush2.bf16.xpose.msra.mxu0 0
    %615 = vmatprep.subr.bf16.mxu0 0
    %616 = vmatpush2.bf16.xpose.msra.mxu0 0
    %617 = vmatprep.mubr.bf16.mxu0 0
    %618 = vmatmul.mubr.bf16.gmra.mxu0 %v580
    %v619 = vpop.f32.mrf.mxu0
    %v620 = vadd.f32 %v574, %v619
    %v621 = vpop.f32.mrf.mxu0
    %v622 = vpop.f32.mrf.mxu0
    %v623 = vpop.f32.mrf.mxu0
    %624 = vdwg.mxu0
    %625 = vrot.lane.b32.xlu0 %v172, 96
    %v626 = vpop.permute.xlu0 %625
    %627 = vrot.lane.b32.xlu0 %v172, 32
    %v628 = vpop.permute.xlu0 %627
    %v630 = vsel %vm125, %v626, 0
    %v633 = vsel %vm125, %v628, 0
    %635 = vmatprep.subr.bf16.mxu0 0
    %636 = vmatpush1.bf16.xpose.msra.mxu0 0
    %637 = vmatprep.subr.bf16.mxu0 0
    %638 = vmatpush1.bf16.xpose.msra.mxu0 0
    %639 = vmatprep.subr.bf16.mxu0 0
    %640 = vmatpush1.bf16.xpose.msra.mxu0 0
    %641 = vmatprep.subr.bf16.mxu0 0
    %642 = vmatpush1.bf16.xpose.msra.mxu0 0
    %643 = vmatprep.subr.bf16.mxu0 0
    %644 = vmatpush1.bf16.xpose.msra.mxu0 0
    %645 = vmatprep.subr.bf16.mxu0 0
    %646 = vmatpush1.bf16.xpose.msra.mxu0 0
    %647 = vmatprep.subr.bf16.mxu0 0
    %648 = vmatpush1.bf16.xpose.msra.mxu0 0
    %649 = vmatprep.subr.bf16.mxu0 0
    %650 = vmatpush1.bf16.xpose.msra.mxu0 %v633
    %651 = vmatprep.subr.bf16.mxu0 0
    %652 = vmatpush2.bf16.xpose.msra.mxu0 0
    %653 = vmatprep.subr.bf16.mxu0 0
    %654 = vmatpush2.bf16.xpose.msra.mxu0 0
    %655 = vmatprep.subr.bf16.mxu0 0
    %656 = vmatpush2.bf16.xpose.msra.mxu0 0
    %657 = vmatprep.subr.bf16.mxu0 0
    %658 = vmatpush2.bf16.xpose.msra.mxu0 0
    %659 = vmatprep.subr.bf16.mxu0 0
    %660 = vmatpush2.bf16.xpose.msra.mxu0 0
    %661 = vmatprep.subr.bf16.mxu0 0
    %662 = vmatpush2.bf16.xpose.msra.mxu0 0
    %663 = vmatprep.subr.bf16.mxu0 0
    %664 = vmatpush2.bf16.xpose.msra.mxu0 0
    %665 = vmatprep.subr.bf16.mxu0 0
    %666 = vmatpush2.bf16.xpose.msra.mxu0 0
    %667 = vmatprep.mubr.bf16.mxu0 0
    %668 = vmatmul.mubr.bf16.gmra.mxu0 %v630
    %v669 = vpop.f32.mrf.mxu0
    %v670 = vadd.f32 %v574, %v669
    %v671 = vpop.f32.mrf.mxu0
    %v672 = vpop.f32.mrf.mxu0
    %v673 = vpop.f32.mrf.mxu0
    %674 = vdwg.mxu0
    %v675 = vsel %vm221, %v620, -inf
    %676 = vmax.xlane.f32.xlu0 %v675
    %v677 = vpop.xlane.xlu0 %676
    %v678 = vsel %vm221, %v670, -inf
    %679 = vmax.xlane.f32.xlu0 %v678
    %v680 = vpop.xlane.xlu0 %679
    %v681 = vsub.f32 %v620, %v677
    %v682 = vsub.f32 %v670, %v680
    %v683 = vmul.f32 %v681, 1.442695
    %v684 = vpow.pop %v683
    %v685 = vmul.f32 %v682, 1.442695
    %v686 = vpow.pop %v685
    %v687 = vsel %vm221, %v684, 0.0
    %688 = vadd.xlane.f32.xlu0 %v687
    %v689 = vpop.xlane.xlu0 %688
    %v690 = vsel %vm221, %v686, 0.0
    %691 = vadd.xlane.f32.xlu0 %v690
    %v692 = vpop.xlane.xlu0 %691
    %v693 = vrcp.pop %v689
    %v694 = vrcp.pop %v692
    %v695 = vmul.f32 %v684, %v693
    %v696 = vmul.f32 %v686, %v694
    %v697 = vpack.c.bf16 %v695, %v695
    %v698 = vpack.c.bf16 %v696, %v696
    %699 = vrot.lane.b32.xlu0 %v119, 64
    %v700 = vpop.permute.xlu0 %699
    %v701 = vrot.slane %v700, 4
    %v703 = vsel %vm221, %v697, 0
    %v706 = vsel %vm250, %v701, 0
    %708 = vmatprep.subr.bf16.mxu0 0
    %709 = vmatpush1.bf16.msra.mxu0 0
    %710 = vmatprep.subr.bf16.mxu0 0
    %711 = vmatpush1.bf16.msra.mxu0 0
    %712 = vmatprep.subr.bf16.mxu0 0
    %713 = vmatpush1.bf16.msra.mxu0 0
    %714 = vmatprep.subr.bf16.mxu0 0
    %715 = vmatpush1.bf16.msra.mxu0 0
    %716 = vmatprep.subr.bf16.mxu0 0
    %717 = vmatpush1.bf16.msra.mxu0 0
    %718 = vmatprep.subr.bf16.mxu0 0
    %719 = vmatpush1.bf16.msra.mxu0 0
    %720 = vmatprep.subr.bf16.mxu0 0
    %721 = vmatpush1.bf16.msra.mxu0 0
    %722 = vmatprep.subr.bf16.mxu0 0
    %723 = vmatpush1.bf16.msra.mxu0 %v706
    %724 = vmatprep.subr.bf16.mxu0 0
    %725 = vmatpush2.bf16.msra.mxu0 0
    %726 = vmatprep.subr.bf16.mxu0 0
    %727 = vmatpush2.bf16.msra.mxu0 0
    %728 = vmatprep.subr.bf16.mxu0 0
    %729 = vmatpush2.bf16.msra.mxu0 0
    %730 = vmatprep.subr.bf16.mxu0 0
    %731 = vmatpush2.bf16.msra.mxu0 0
    %732 = vmatprep.subr.bf16.mxu0 0
    %733 = vmatpush2.bf16.msra.mxu0 0
    %734 = vmatprep.subr.bf16.mxu0 0
    %735 = vmatpush2.bf16.msra.mxu0 0
    %736 = vmatprep.subr.bf16.mxu0 0
    %737 = vmatpush2.bf16.msra.mxu0 0
    %738 = vmatprep.subr.bf16.mxu0 0
    %739 = vmatpush2.bf16.msra.mxu0 0
    %740 = vmatprep.mubr.bf16.mxu0 0
    %741 = vmatmul.mubr.bf16.gmra.mxu0 %v703
    %v742 = vpop.f32.mrf.mxu0
    %v743 = vadd.f32 0.0, %v742
    %v744 = vpop.f32.mrf.mxu0
    %v745 = vpop.f32.mrf.mxu0
    %v746 = vpop.f32.mrf.mxu0
    %747 = vdwg.mxu0
    %748 = vrot.lane.b32.xlu0 %v120, 64
    %v749 = vpop.permute.xlu0 %748
    %v750 = vrot.slane %v749, 4
    %v752 = vsel %vm221, %v698, 0
    %v755 = vsel %vm250, %v750, 0
    %757 = vmatprep.subr.bf16.mxu0 0
    %758 = vmatpush1.bf16.msra.mxu0 0
    %759 = vmatprep.subr.bf16.mxu0 0
    %760 = vmatpush1.bf16.msra.mxu0 0
    %761 = vmatprep.subr.bf16.mxu0 0
    %762 = vmatpush1.bf16.msra.mxu0 0
    %763 = vmatprep.subr.bf16.mxu0 0
    %764 = vmatpush1.bf16.msra.mxu0 0
    %765 = vmatprep.subr.bf16.mxu0 0
    %766 = vmatpush1.bf16.msra.mxu0 0
    %767 = vmatprep.subr.bf16.mxu0 0
    %768 = vmatpush1.bf16.msra.mxu0 0
    %769 = vmatprep.subr.bf16.mxu0 0
    %770 = vmatpush1.bf16.msra.mxu0 0
    %771 = vmatprep.subr.bf16.mxu0 0
    %772 = vmatpush1.bf16.msra.mxu0 %v755
    %773 = vmatprep.subr.bf16.mxu0 0
    %774 = vmatpush2.bf16.msra.mxu0 0
    %775 = vmatprep.subr.bf16.mxu0 0
    %776 = vmatpush2.bf16.msra.mxu0 0
    %777 = vmatprep.subr.bf16.mxu0 0
    %778 = vmatpush2.bf16.msra.mxu0 0
    %779 = vmatprep.subr.bf16.mxu0 0
    %780 = vmatpush2.bf16.msra.mxu0 0
    %781 = vmatprep.subr.bf16.mxu0 0
    %782 = vmatpush2.bf16.msra.mxu0 0
    %783 = vmatprep.subr.bf16.mxu0 0
    %784 = vmatpush2.bf16.msra.mxu0 0
    %785 = vmatprep.subr.bf16.mxu0 0
    %786 = vmatpush2.bf16.msra.mxu0 0
    %787 = vmatprep.subr.bf16.mxu0 0
    %788 = vmatpush2.bf16.msra.mxu0 0
    %789 = vmatprep.mubr.bf16.mxu0 0
    %790 = vmatmul.mubr.bf16.gmra.mxu0 %v752
    %v791 = vpop.f32.mrf.mxu0
    %v792 = vadd.f32 0.0, %v791
    %v793 = vpop.f32.mrf.mxu0
    %v794 = vpop.f32.mrf.mxu0
    %v795 = vpop.f32.mrf.mxu0
    %796 = vdwg.mxu0
    %v797 = vmax.f32 %v743, -1.0
    %v798 = vmax.f32 %v792, -1.0
    %v799 = vmin.f32 %v797, 1.0
    %v800 = vmin.f32 %v798, 1.0
    %s801 = scalar_lea.vmem %s3, 24
    %v802 = vld [vmem:[%s801] sm:$0xff]
    %803 = vrot.lane.b32.xlu0 %v122, 80
    %v804 = vpop.permute.xlu0 %803
    %805 = vrot.lane.b32.xlu0 %v122, 16
    %v806 = vpop.permute.xlu0 %805
    %v808 = vsel %vm125, %v804, 0
    %v811 = vsel %vm125, %v806, 0
    %813 = vmatprep.subr.bf16.mxu0 0
    %814 = vmatpush1.bf16.xpose.msra.mxu0 0
    %815 = vmatprep.subr.bf16.mxu0 0
    %816 = vmatpush1.bf16.xpose.msra.mxu0 0
    %817 = vmatprep.subr.bf16.mxu0 0
    %818 = vmatpush1.bf16.xpose.msra.mxu0 0
    %819 = vmatprep.subr.bf16.mxu0 0
    %820 = vmatpush1.bf16.xpose.msra.mxu0 0
    %821 = vmatprep.subr.bf16.mxu0 0
    %822 = vmatpush1.bf16.xpose.msra.mxu0 0
    %823 = vmatprep.subr.bf16.mxu0 0
    %824 = vmatpush1.bf16.xpose.msra.mxu0 0
    %825 = vmatprep.subr.bf16.mxu0 0
    %826 = vmatpush1.bf16.xpose.msra.mxu0 0
    %827 = vmatprep.subr.bf16.mxu0 0
    %828 = vmatpush1.bf16.xpose.msra.mxu0 %v811
    %829 = vmatprep.subr.bf16.mxu0 0
    %830 = vmatpush2.bf16.xpose.msra.mxu0 0
    %831 = vmatprep.subr.bf16.mxu0 0
    %832 = vmatpush2.bf16.xpose.msra.mxu0 0
    %833 = vmatprep.subr.bf16.mxu0 0
    %834 = vmatpush2.bf16.xpose.msra.mxu0 0
    %835 = vmatprep.subr.bf16.mxu0 0
    %836 = vmatpush2.bf16.xpose.msra.mxu0 0
    %837 = vmatprep.subr.bf16.mxu0 0
    %838 = vmatpush2.bf16.xpose.msra.mxu0 0
    %839 = vmatprep.subr.bf16.mxu0 0
    %840 = vmatpush2.bf16.xpose.msra.mxu0 0
    %841 = vmatprep.subr.bf16.mxu0 0
    %842 = vmatpush2.bf16.xpose.msra.mxu0 0
    %843 = vmatprep.subr.bf16.mxu0 0
    %844 = vmatpush2.bf16.xpose.msra.mxu0 0
    %845 = vmatprep.mubr.bf16.mxu0 0
    %846 = vmatmul.mubr.bf16.gmra.mxu0 %v808
    %v847 = vpop.f32.mrf.mxu0
    %v848 = vadd.f32 %v802, %v847
    %v849 = vpop.f32.mrf.mxu0
    %v850 = vpop.f32.mrf.mxu0
    %v851 = vpop.f32.mrf.mxu0
    %852 = vdwg.mxu0
    %853 = vrot.lane.b32.xlu0 %v172, 80
    %v854 = vpop.permute.xlu0 %853
    %855 = vrot.lane.b32.xlu0 %v172, 16
    %v856 = vpop.permute.xlu0 %855
    %v858 = vsel %vm125, %v854, 0
    %v861 = vsel %vm125, %v856, 0
    %863 = vmatprep.subr.bf16.mxu0 0
    %864 = vmatpush1.bf16.xpose.msra.mxu0 0
    %865 = vmatprep.subr.bf16.mxu0 0
    %866 = vmatpush1.bf16.xpose.msra.mxu0 0
    %867 = vmatprep.subr.bf16.mxu0 0
    %868 = vmatpush1.bf16.xpose.msra.mxu0 0
    %869 = vmatprep.subr.bf16.mxu0 0
    %870 = vmatpush1.bf16.xpose.msra.mxu0 0
    %871 = vmatprep.subr.bf16.mxu0 0
    %872 = vmatpush1.bf16.xpose.msra.mxu0 0
    %873 = vmatprep.subr.bf16.mxu0 0
    %874 = vmatpush1.bf16.xpose.msra.mxu0 0
    %875 = vmatprep.subr.bf16.mxu0 0
    %876 = vmatpush1.bf16.xpose.msra.mxu0 0
    %877 = vmatprep.subr.bf16.mxu0 0
    %878 = vmatpush1.bf16.xpose.msra.mxu0 %v861
    %879 = vmatprep.subr.bf16.mxu0 0
    %880 = vmatpush2.bf16.xpose.msra.mxu0 0
    %881 = vmatprep.subr.bf16.mxu0 0
    %882 = vmatpush2.bf16.xpose.msra.mxu0 0
    %883 = vmatprep.subr.bf16.mxu0 0
    %884 = vmatpush2.bf16.xpose.msra.mxu0 0
    %885 = vmatprep.subr.bf16.mxu0 0
    %886 = vmatpush2.bf16.xpose.msra.mxu0 0
    %887 = vmatprep.subr.bf16.mxu0 0
    %888 = vmatpush2.bf16.xpose.msra.mxu0 0
    %889 = vmatprep.subr.bf16.mxu0 0
    %890 = vmatpush2.bf16.xpose.msra.mxu0 0
    %891 = vmatprep.subr.bf16.mxu0 0
    %892 = vmatpush2.bf16.xpose.msra.mxu0 0
    %893 = vmatprep.subr.bf16.mxu0 0
    %894 = vmatpush2.bf16.xpose.msra.mxu0 0
    %895 = vmatprep.mubr.bf16.mxu0 0
    %896 = vmatmul.mubr.bf16.gmra.mxu0 %v858
    %v897 = vpop.f32.mrf.mxu0
    %v898 = vadd.f32 %v802, %v897
    %v899 = vpop.f32.mrf.mxu0
    %v900 = vpop.f32.mrf.mxu0
    %v901 = vpop.f32.mrf.mxu0
    %902 = vdwg.mxu0
    %v903 = vsel %vm221, %v848, -inf
    %904 = vmax.xlane.f32.xlu0 %v903
    %v905 = vpop.xlane.xlu0 %904
    %v906 = vsel %vm221, %v898, -inf
    %907 = vmax.xlane.f32.xlu0 %v906
    %v908 = vpop.xlane.xlu0 %907
    %v909 = vsub.f32 %v848, %v905
    %v910 = vsub.f32 %v898, %v908
    %v911 = vmul.f32 %v909, 1.442695
    %v912 = vpow.pop %v911
    %v913 = vmul.f32 %v910, 1.442695
    %v914 = vpow.pop %v913
    %v915 = vsel %vm221, %v912, 0.0
    %916 = vadd.xlane.f32.xlu0 %v915
    %v917 = vpop.xlane.xlu0 %916
    %v918 = vsel %vm221, %v914, 0.0
    %919 = vadd.xlane.f32.xlu0 %v918
    %v920 = vpop.xlane.xlu0 %919
    %v921 = vrcp.pop %v917
    %v922 = vrcp.pop %v920
    %v923 = vmul.f32 %v912, %v921
    %v924 = vmul.f32 %v914, %v922
    %v925 = vpack.c.bf16 %v923, %v923
    %v926 = vpack.c.bf16 %v924, %v924
    %927 = vrot.lane.b32.xlu0 %v119, 32
    %v928 = vpop.permute.xlu0 %927
    %v929 = vrot.slane %v928, 4
    %v931 = vsel %vm221, %v925, 0
    %v934 = vsel %vm250, %v929, 0
    %936 = vmatprep.subr.bf16.mxu0 0
    %937 = vmatpush1.bf16.msra.mxu0 0
    %938 = vmatprep.subr.bf16.mxu0 0
    %939 = vmatpush1.bf16.msra.mxu0 0
    %940 = vmatprep.subr.bf16.mxu0 0
    %941 = vmatpush1.bf16.msra.mxu0 0
    %942 = vmatprep.subr.bf16.mxu0 0
    %943 = vmatpush1.bf16.msra.mxu0 0
    %944 = vmatprep.subr.bf16.mxu0 0
    %945 = vmatpush1.bf16.msra.mxu0 0
    %946 = vmatprep.subr.bf16.mxu0 0
    %947 = vmatpush1.bf16.msra.mxu0 0
    %948 = vmatprep.subr.bf16.mxu0 0
    %949 = vmatpush1.bf16.msra.mxu0 0
    %950 = vmatprep.subr.bf16.mxu0 0
    %951 = vmatpush1.bf16.msra.mxu0 %v934
    %952 = vmatprep.subr.bf16.mxu0 0
    %953 = vmatpush2.bf16.msra.mxu0 0
    %954 = vmatprep.subr.bf16.mxu0 0
    %955 = vmatpush2.bf16.msra.mxu0 0
    %956 = vmatprep.subr.bf16.mxu0 0
    %957 = vmatpush2.bf16.msra.mxu0 0
    %958 = vmatprep.subr.bf16.mxu0 0
    %959 = vmatpush2.bf16.msra.mxu0 0
    %960 = vmatprep.subr.bf16.mxu0 0
    %961 = vmatpush2.bf16.msra.mxu0 0
    %962 = vmatprep.subr.bf16.mxu0 0
    %963 = vmatpush2.bf16.msra.mxu0 0
    %964 = vmatprep.subr.bf16.mxu0 0
    %965 = vmatpush2.bf16.msra.mxu0 0
    %966 = vmatprep.subr.bf16.mxu0 0
    %967 = vmatpush2.bf16.msra.mxu0 0
    %968 = vmatprep.mubr.bf16.mxu0 0
    %969 = vmatmul.mubr.bf16.gmra.mxu0 %v931
    %v970 = vpop.f32.mrf.mxu0
    %v971 = vadd.f32 0.0, %v970
    %v972 = vpop.f32.mrf.mxu0
    %v973 = vpop.f32.mrf.mxu0
    %v974 = vpop.f32.mrf.mxu0
    %975 = vdwg.mxu0
    %976 = vrot.lane.b32.xlu0 %v120, 32
    %v977 = vpop.permute.xlu0 %976
    %v978 = vrot.slane %v977, 4
    %v980 = vsel %vm221, %v926, 0
    %v983 = vsel %vm250, %v978, 0
    %985 = vmatprep.subr.bf16.mxu0 0
    %986 = vmatpush1.bf16.msra.mxu0 0
    %987 = vmatprep.subr.bf16.mxu0 0
    %988 = vmatpush1.bf16.msra.mxu0 0
    %989 = vmatprep.subr.bf16.mxu0 0
    %990 = vmatpush1.bf16.msra.mxu0 0
    %991 = vmatprep.subr.bf16.mxu0 0
    %992 = vmatpush1.bf16.msra.mxu0 0
    %993 = vmatprep.subr.bf16.mxu0 0
    %994 = vmatpush1.bf16.msra.mxu0 0
    %995 = vmatprep.subr.bf16.mxu0 0
    %996 = vmatpush1.bf16.msra.mxu0 0
    %997 = vmatprep.subr.bf16.mxu0 0
    %998 = vmatpush1.bf16.msra.mxu0 0
    %999 = vmatprep.subr.bf16.mxu0 0
    %1000 = vmatpush1.bf16.msra.mxu0 %v983
    %1001 = vmatprep.subr.bf16.mxu0 0
    %1002 = vmatpush2.bf16.msra.mxu0 0
    %1003 = vmatprep.subr.bf16.mxu0 0
    %1004 = vmatpush2.bf16.msra.mxu0 0
    %1005 = vmatprep.subr.bf16.mxu0 0
    %1006 = vmatpush2.bf16.msra.mxu0 0
    %1007 = vmatprep.subr.bf16.mxu0 0
    %1008 = vmatpush2.bf16.msra.mxu0 0
    %1009 = vmatprep.subr.bf16.mxu0 0
    %1010 = vmatpush2.bf16.msra.mxu0 0
    %1011 = vmatprep.subr.bf16.mxu0 0
    %1012 = vmatpush2.bf16.msra.mxu0 0
    %1013 = vmatprep.subr.bf16.mxu0 0
    %1014 = vmatpush2.bf16.msra.mxu0 0
    %1015 = vmatprep.subr.bf16.mxu0 0
    %1016 = vmatpush2.bf16.msra.mxu0 0
    %1017 = vmatprep.mubr.bf16.mxu0 0
    %1018 = vmatmul.mubr.bf16.gmra.mxu0 %v980
    %v1019 = vpop.f32.mrf.mxu0
    %v1020 = vadd.f32 0.0, %v1019
    %v1021 = vpop.f32.mrf.mxu0
    %v1022 = vpop.f32.mrf.mxu0
    %v1023 = vpop.f32.mrf.mxu0
    %1024 = vdwg.mxu0
    %v1025 = vmax.f32 %v971, -1.0
    %v1026 = vmax.f32 %v1020, -1.0
    %v1027 = vmin.f32 %v1025, 1.0
    %v1028 = vmin.f32 %v1026, 1.0
    %1031 = vrot.lane.b32.xlu0 %v571, 32
    %v1032 = vpop.permute.xlu0 %1031
    %1033 = vrot.lane.b32.xlu0 %v572, 32
    %v1034 = vpop.permute.xlu0 %1033
    %1039 = vrot.lane.b32.xlu0 %v799, 64
    %v1040 = vpop.permute.xlu0 %1039
    %1041 = vrot.lane.b32.xlu0 %v800, 64
    %v1042 = vpop.permute.xlu0 %1041
    %1047 = vrot.lane.b32.xlu0 %v1027, 96
    %v1048 = vpop.permute.xlu0 %1047
    %1049 = vrot.lane.b32.xlu0 %v1028, 96
    %v1050 = vpop.permute.xlu0 %1049
    %v1053 = vsel %vm64, %v343, %v1032
    %v1054 = vsel %vm64, %v344, %v1034
    %vm1055 = vcmask 523264
    %v1056 = vsel %vm1055, %v1053, %v1040
    %v1057 = vsel %vm1055, %v1054, %v1042
    %vm1058 = vcmask 785408
    %v1059 = vsel %vm1058, %v1056, %v1048
    %v1060 = vsel %vm1058, %v1057, %v1050
    %v1061 = vpack.c.bf16 %v1060, %v1059
    %v1062 = vld [vmem:[%s4] sm:$0xf]
    %v1063 = vld [vmem:[%s4 + $0x4] sm:$0xf]
    %v1064 = vld [vmem:[%s4 + $0x8] sm:$0xf]
    %v1065 = vld [vmem:[%s4 + $0xc] sm:$0xf]
    %v1066 = vld [vmem:[%s4 + $0x10] sm:$0xf]
    %v1067 = vld [vmem:[%s4 + $0x14] sm:$0xf]
    %v1068 = vld [vmem:[%s4 + $0x18] sm:$0xf]
    %v1069 = vld [vmem:[%s4 + $0x1c] sm:$0xf]
    %v1070 = vld [vmem:[%s4 + $0x20] sm:$0xf]
    %v1071 = vld [vmem:[%s4 + $0x24] sm:$0xf]
    %v1072 = vld [vmem:[%s4 + $0x28] sm:$0xf]
    %v1073 = vld [vmem:[%s4 + $0x2c] sm:$0xf]
    %v1074 = vld [vmem:[%s4 + $0x30] sm:$0xf]
    %v1075 = vld [vmem:[%s4 + $0x34] sm:$0xf]
    %v1076 = vld [vmem:[%s4 + $0x38] sm:$0xf]
    %v1077 = vld [vmem:[%s4 + $0x3c] sm:$0xf]
    %v1078 = vld [vmem:[%s5] sm:$0x1]
    %v1080 = vlaneseq
    %v1081 = vshrl.u32 %v1080, 7
    %v1082 = vsub.s32 0, %v1081
    %v1083 = vrot.slane %v1078, %v1082
    %v1101 = vunpack.c.l.b16 %v1062
    %v1102 = vunpack.c.l.b16 %v1063
    %v1103 = vunpack.c.l.b16 %v1064
    %v1104 = vunpack.c.l.b16 %v1065
    %v1105 = vunpack.c.l.b16 %v1066
    %v1106 = vunpack.c.l.b16 %v1067
    %v1107 = vunpack.c.l.b16 %v1068
    %v1108 = vunpack.c.l.b16 %v1069
    %v1109 = vunpack.c.l.b16 %v1070
    %v1110 = vunpack.c.l.b16 %v1071
    %v1111 = vunpack.c.l.b16 %v1072
    %v1112 = vunpack.c.l.b16 %v1073
    %v1113 = vunpack.c.l.b16 %v1074
    %v1114 = vunpack.c.l.b16 %v1075
    %v1115 = vunpack.c.l.b16 %v1076
    %v1116 = vunpack.c.l.b16 %v1077
    %v1117 = vpack.c.b16 %v1102, %v1101
    %v1118 = vpack.c.b16 %v1104, %v1103
    %v1119 = vpack.c.b16 %v1106, %v1105
    %v1120 = vpack.c.b16 %v1108, %v1107
    %v1121 = vpack.c.b16 %v1110, %v1109
    %v1122 = vpack.c.b16 %v1112, %v1111
    %v1123 = vpack.c.b16 %v1114, %v1113
    %v1124 = vpack.c.b16 %v1116, %v1115
    %1133 = vmatprep.subr.bf16.mxu0 0
    %1134 = vmatpush1.bf16.msra.mxu0 %v1124
    %1135 = vmatprep.subr.bf16.mxu0 0
    %1136 = vmatpush1.bf16.msra.mxu0 %v1123
    %1137 = vmatprep.subr.bf16.mxu0 0
    %1138 = vmatpush1.bf16.msra.mxu0 %v1122
    %1139 = vmatprep.subr.bf16.mxu0 0
    %1140 = vmatpush1.bf16.msra.mxu0 %v1121
    %1141 = vmatprep.subr.bf16.mxu0 0
    %1142 = vmatpush1.bf16.msra.mxu0 %v1120
    %1143 = vmatprep.subr.bf16.mxu0 0
    %1144 = vmatpush1.bf16.msra.mxu0 %v1119
    %1145 = vmatprep.subr.bf16.mxu0 0
    %1146 = vmatpush1.bf16.msra.mxu0 %v1118
    %1147 = vmatprep.subr.bf16.mxu0 0
    %1148 = vmatpush1.bf16.msra.mxu0 %v1117
    %1149 = vmatprep.subr.bf16.mxu0 0
    %1150 = vmatpush2.bf16.msra.mxu0 0
    %1151 = vmatprep.subr.bf16.mxu0 0
    %1152 = vmatpush2.bf16.msra.mxu0 0
    %1153 = vmatprep.subr.bf16.mxu0 0
    %1154 = vmatpush2.bf16.msra.mxu0 0
    %1155 = vmatprep.subr.bf16.mxu0 0
    %1156 = vmatpush2.bf16.msra.mxu0 0
    %1157 = vmatprep.subr.bf16.mxu0 0
    %1158 = vmatpush2.bf16.msra.mxu0 0
    %1159 = vmatprep.subr.bf16.mxu0 0
    %1160 = vmatpush2.bf16.msra.mxu0 0
    %1161 = vmatprep.subr.bf16.mxu0 0
    %1162 = vmatpush2.bf16.msra.mxu0 0
    %1163 = vmatprep.subr.bf16.mxu0 0
    %1164 = vmatpush2.bf16.msra.mxu0 0
    %1165 = vmatprep.mubr.bf16.mxu0 0
    %1166 = vmatmul.mubr.bf16.gmra.mxu0 %v1061
    %v1167 = vpop.f32.mrf.mxu0
    %v1168 = vadd.f32 %v1083, %v1167
    %v1169 = vpop.f32.mrf.mxu0
    %v1170 = vpop.f32.mrf.mxu0
    %v1171 = vadd.f32 %v1083, %v1170
    %v1172 = vpop.f32.mrf.mxu0
    %1173 = vdwg.mxu0
    %v1174 = vadd.f32 %v25, %v1168
    %v1175 = vadd.f32 %v26, %v1171
    %1176 = vst.msk [vmem:[#allocation2] sm:$0xff] %vm64, %v1174
    %1177 = vst.msk [vmem:[#allocation2 + $0x8] sm:$0xff] %vm64, %v1175
    // Predicated region
    $region26: #{tpu_custom_call.1} parent=1 // pred_check
      _
    $region27: #{tpu_custom_call.1} parent=1 // pred_check_branch
      %1179 = sbr.rel (0) target = $region29
    $region28: #{tpu_custom_call.1} parent=1 // pred_region
      %s1181 = ssub.s32 256, 256
      %1182 = vsyncadd [#allocation3], %s1181
      %s1183 = sshll.u32 [#allocation2], 4
      %s1184 = int_to_ptr.vmem [resolvable:$true] %s1183
      %1189 = dma.vmem_to_hbm [thread:$0]  %s1184, 256, %s6, [#allocation3], 128, 128, 8
    $region29: #{tpu_custom_call.1} parent=1 // pred_fallthru
      _
    // Predicated region
    $region30: #{tpu_custom_call.1} parent=1 // pred_check
      _
    $region31: #{tpu_custom_call.1} parent=1 // pred_check_branch
      %1191 = sbr.rel (0) target = $region33
    $region32: #{tpu_custom_call.1} parent=1 // pred_region
      %1192 = dma.done [#allocation3], 256
    $region33: #{tpu_custom_call.1} parent=1 // pred_fallthru
      _
    %1193 = vsyncpa [#allocation3], 1

</llo_original>
